<compile_context>
chip_gen: v6e
topology: v6e:2x2x1
jax: 0.10.0
libtpu: 0.0.40
codegen_flags: <defaults>
</compile_context>

<pallas_src>
import functools

import jax
import jax.numpy as jnp
from jax.experimental import pallas as pl
from jax.experimental.pallas import tpu as pltpu

# ---------------- config (mirrors GPTNoPEAttention.__init__) ----------------
BATCH = 2
SEQ = 8
HIDDEN = 32
NUM_HEADS = 4
HEAD_SIZE = HIDDEN // NUM_HEADS                  # 8
ROTARY_PCT = 0.25
ROTARY_NDIMS = int(HEAD_SIZE * ROTARY_PCT)       # 2
NORM_FACTOR = HEAD_SIZE ** (-0.5)
# attention_dropout = 0.0  -> identity (eval semantics)


# ---------------- fused Pallas kernel (single grid step) ----------------
def _fused_nope_attn_kernel(x_ref, hf_ref, wqkv_ref, bqkv_ref, wd_ref, bd_ref, o_ref, *,
                            seq, num_heads, head_size, rotary_ndims, norm_factor):
    x = x_ref[...]                                    # [B*T, H]  (batch folded into sublanes)
    bt = x.shape[0]
    hs = head_size
    neg = jnp.float32(-1e30)                          # large-but-safe; exp() underflows to exactly 0

    # QKV projection on the whole [B*T, H] slab: one [16,32]x[32,96] matmul.
    qkv = (jnp.dot(x, wqkv_ref[...], preferred_element_type=jnp.float32)
           + bqkv_ref[...])                           # [B*T, 3H]

    # NoPE score identity: cat([q, q_pass]) . cat([k, k_pass]) == sum_d q_d k_d w_d
    # with w_d = 1 for d < rotary_ndims else 2.  Fold norm_factor into the same
    # per-dim scale on k -> a single dot per head, no second dot_general.
    d_iota = jax.lax.broadcasted_iota(jnp.int32, (1, hs), 1)
    k_scale = jnp.where(d_iota < rotary_ndims,
                        jnp.float32(norm_factor), jnp.float32(2.0 * norm_factor))  # [1, hs]

    # Combined bias, built ONCE and shared by every head:
    #   allowed(i,j) = same batch AND causal;  allowed -> + HF additive mask(key j)
    #   blocked      -> -1e30 (softmax weight underflows to 0, exactly matching
    #                   the reference's per-batch causal softmax).
    row = jax.lax.broadcasted_iota(jnp.int32, (bt, bt), 0)
    col = jax.lax.broadcasted_iota(jnp.int32, (bt, bt), 1)
    assert seq & (seq - 1) == 0, "seq must be a power of two for the shift trick"
    shift = seq.bit_length() - 1
    same_batch = (row >> shift) == (col >> shift)
    allowed = (col <= row) & same_batch
    bias = jnp.where(allowed, jnp.broadcast_to(hf_ref[...], (bt, bt)), neg)   # [B*T, B*T]

    qk_dims = (((1,), (1,)), ((), ()))                # contract last dims (no explicit k.T)

    # Output accumulator initialized with the dense bias; each head adds its
    # slice of the output projection directly (no lane-dim concat of heads).
    # NOTE: assumes W_qkv columns are head-major [q|k|v] per head, matching the
    # reference's reshape(B, T, NH, 3*hs).
    out = bd_ref[...].astype(jnp.float32)             # [1, H], broadcasts on first add
    for h in range(num_heads):                        # statically unrolled (NH = 4)
        base = h * 3 * hs
        q = qkv[:, base:base + hs]                    # [B*T, hs]
        k = qkv[:, base + hs:base + 2 * hs] * k_scale # [B*T, hs], pre-scaled
        v = qkv[:, base + 2 * hs:base + 3 * hs]       # [B*T, hs]

        scores = jax.lax.dot_general(q, k, qk_dims,
                                     preferred_element_type=jnp.float32)      # [B*T, B*T]
        scores = scores + bias

        # softmax over keys (f32 throughout; reciprocal goes to the EUP slot)
        m = jnp.max(scores, axis=-1, keepdims=True)
        e = jnp.exp(scores - m)
        denom = jnp.sum(e, axis=-1, keepdims=True)
        probs = e * pl.reciprocal(denom, approx=True)

        head_out = jnp.dot(probs, v, preferred_element_type=jnp.float32)      # [B*T, hs]
        # merge_heads + dense fused: this head's columns of W_dense
        out = out + jnp.dot(head_out, wd_ref[h * hs:(h + 1) * hs, :],
                            preferred_element_type=jnp.float32)               # [B*T, H]

    o_ref[...] = out.astype(o_ref.dtype)              # one contiguous [B*T, H] store


# ---------------- forward pass wrapper ----------------
def gpt_nope_attention_forward(hidden_states, attention_mask, position_ids, params):
    """Mirrors GPTNoPEAttention.forward with layer_past=None, head_mask=None,
    use_cache=False, output_attentions=False. position_ids is unused (NoPE)."""
    del position_ids
    B, T, H = hidden_states.shape

    # Fold batch into sublanes: [B, T, H] -> [B*T, H] (free reshape outside the kernel).
    x_flat = hidden_states.reshape(B * T, H)
    # HF-style [B, 1, 1, T] additive mask -> per-flattened-key vector [1, B*T].
    hf = attention_mask.reshape(1, B * T).astype(jnp.float32)

    kernel = functools.partial(
        _fused_nope_attn_kernel,
        seq=T,
        num_heads=NUM_HEADS,
        head_size=HEAD_SIZE,
        rotary_ndims=ROTARY_NDIMS,
        norm_factor=NORM_FACTOR,
    )

    out_flat = pl.pallas_call(
        kernel,
        out_shape=jax.ShapeDtypeStruct((B * T, H), hidden_states.dtype),
        grid_spec=pltpu.PrefetchScalarGridSpec(
            num_scalar_prefetch=0,
            grid=(1,),                                    # single step: whole problem fits one invocation
            in_specs=[
                pl.BlockSpec((B * T, H), lambda i: (0, 0)),        # hidden_states (flattened)
                pl.BlockSpec((1, B * T), lambda i: (0, 0)),        # HF additive mask per key
                pl.BlockSpec((H, 3 * H), lambda i: (0, 0)),        # W_qkv^T
                pl.BlockSpec((1, 3 * H), lambda i: (0, 0)),        # b_qkv
                pl.BlockSpec((H, H), lambda i: (0, 0)),            # W_dense^T
                pl.BlockSpec((1, H), lambda i: (0, 0)),            # b_dense
            ],
            out_specs=pl.BlockSpec((B * T, H), lambda i: (0, 0)),
        ),
        compiler_params=pltpu.CompilerParams(
            dimension_semantics=("arbitrary",),           # one step: no megacore split needed
        ),
    )(x_flat, hf,
      params["w_qkv_t"], params["b_qkv"].reshape(1, 3 * H),
      params["w_dense_t"], params["b_dense"].reshape(1, H))

    return out_flat.reshape(B, T, H)


# ---------------- pure-JAX reference (mirrors the torch module) ----------------
def _reference_forward(hidden_states, attention_mask, params):
    B, T, H = hidden_states.shape
    qkv = hidden_states.reshape(B * T, H) @ params["w_qkv_t"] + params["b_qkv"]
    qkv = qkv.reshape(B, T, NUM_HEADS, 3 * HEAD_SIZE)
    query = jnp.transpose(qkv[..., :HEAD_SIZE], (0, 2, 1, 3))
    key = jnp.transpose(qkv[..., HEAD_SIZE:2 * HEAD_SIZE], (0, 2, 1, 3))
    value = jnp.transpose(qkv[..., 2 * HEAD_SIZE:], (0, 2, 1, 3))
    query = jnp.concatenate([query, query[..., ROTARY_NDIMS:]], axis=-1)
    key = jnp.concatenate([key, key[..., ROTARY_NDIMS:]], axis=-1)
    scores = jnp.einsum("bhqd,bhkd->bhqk", query, key) * NORM_FACTOR
    causal = jnp.tril(jnp.ones((T, T), bool))[None, None]
    scores = jnp.where(causal, scores, jnp.finfo(scores.dtype).min)
    scores = scores + attention_mask
    probs = jax.nn.softmax(scores, axis=-1)
    attn = jnp.einsum("bhqk,bhkd->bhqd", probs, value)
    attn = jnp.transpose(attn, (0, 2, 1, 3)).reshape(B, T, H)
    return (attn.reshape(B * T, H) @ params["w_dense_t"] + params["b_dense"]).reshape(B, T, H)


def init_params(key):
    k1, k2, k3, k4 = jax.random.split(key, 4)
    # stored pre-transposed ([in, out]) relative to torch's nn.Linear [out, in];
    # qkv columns are head-major [q|k|v] per head (matches the reference reshape).
    return {
        "w_qkv_t": jax.random.normal(k1, (HIDDEN, 3 * HIDDEN), jnp.float32) * 0.02,
        "b_qkv": jax.random.normal(k2, (3 * HIDDEN,), jnp.float32) * 0.02,
        "w_dense_t": jax.random.normal(k3, (HIDDEN, HIDDEN), jnp.float32) * 0.02,
        "b_dense": jax.random.normal(k4, (HIDDEN,), jnp.float32) * 0.02,
    }


if __name__ == "__main__":
    root = jax.random.PRNGKey(0)
    kx, kp = jax.random.split(root)

    hidden_states = jax.random.normal(kx, (BATCH, SEQ, HIDDEN), jnp.float32)

    # HF-style additive attention mask [B, 1, 1, T]: 0 = attend, -1e9 = masked.
    attention_mask = jnp.zeros((BATCH, 1, 1, SEQ), jnp.float32)
    attention_mask = attention_mask.at[1, 0, 0, SEQ - 2:].set(-1e9)

    position_ids = jnp.broadcast_to(jnp.arange(SEQ)[None, :], (BATCH, SEQ))  # unused (NoPE)

    params = init_params(kp)

    out = gpt_nope_attention_forward(hidden_states, attention_mask, position_ids, params)
    jax.block_until_ready(out)
    assert out.shape == (BATCH, SEQ, HIDDEN)

    ref = _reference_forward(hidden_states, attention_mask, params)
    # slightly relaxed rtol to accommodate the approx (EUP) reciprocal in softmax
    assert jnp.allclose(out, ref, rtol=5e-3, atol=1e-4), "mismatch vs pure-JAX reference"

    print("KERNEL_OK")
</pallas_src>

<mosaic_0001>
module attributes {stable_mosaic.version = 11 : i64} {
  func.func @_fused_nope_attn_kernel(%arg0: i32, %arg1: memref<16x32xf32, #tpu.memory_space<vmem>>, %arg2: memref<1x16xf32, #tpu.memory_space<vmem>>, %arg3: memref<32x96xf32, #tpu.memory_space<vmem>>, %arg4: memref<1x96xf32, #tpu.memory_space<vmem>>, %arg5: memref<32x32xf32, #tpu.memory_space<vmem>>, %arg6: memref<1x32xf32, #tpu.memory_space<vmem>>, %arg7: memref<16x32xf32, #tpu.memory_space<vmem>>) attributes {dimension_semantics = [#tpu.dimension_semantics<arbitrary>], iteration_bounds = array<i64: 1>, scalar_prefetch = 0 : i64, scratch_operands = 0 : i64, tpu.core_type = #tpu.core_type<tc>, window_params = [{pipeline_mode = #tpu.pipeline_mode<synchronous>, transform_indices = @transform_0, window_bounds = array<i64: 16, 32>}, {pipeline_mode = #tpu.pipeline_mode<synchronous>, transform_indices = @transform_1, window_bounds = array<i64: 1, 16>}, {pipeline_mode = #tpu.pipeline_mode<synchronous>, transform_indices = @transform_2, window_bounds = array<i64: 32, 96>}, {pipeline_mode = #tpu.pipeline_mode<synchronous>, transform_indices = @transform_3, window_bounds = array<i64: 1, 96>}, {pipeline_mode = #tpu.pipeline_mode<synchronous>, transform_indices = @transform_4, window_bounds = array<i64: 32, 32>}, {pipeline_mode = #tpu.pipeline_mode<synchronous>, transform_indices = @transform_5, window_bounds = array<i64: 1, 32>}, {pipeline_mode = #tpu.pipeline_mode<synchronous>, transform_indices = @transform_6, window_bounds = array<i64: 16, 32>}]} {
    %c0 = arith.constant 0 : index
    %c0_0 = arith.constant 0 : index
    %0 = vector.load %arg1[%c0, %c0_0] : memref<16x32xf32, #tpu.memory_space<vmem>>, vector<16x32xf32>
    %c0_1 = arith.constant 0 : index
    %c0_2 = arith.constant 0 : index
    %1 = vector.load %arg3[%c0_1, %c0_2] : memref<32x96xf32, #tpu.memory_space<vmem>>, vector<32x96xf32>
    %cst = arith.constant dense<0.000000e+00> : vector<16x96xf32>
    %2 = tpu.matmul %0, %1, %cst {dimension_numbers = #tpu.dot_dimension_numbers<[1], [0], [0], [1], [0, 0, 1, 1], [], []>} : vector<16x32xf32>, vector<32x96xf32>, vector<16x96xf32> -> vector<16x96xf32>
    %c0_3 = arith.constant 0 : index
    %c0_4 = arith.constant 0 : index
    %3 = vector.load %arg4[%c0_3, %c0_4] : memref<1x96xf32, #tpu.memory_space<vmem>>, vector<1x96xf32>
    %4 = vector.broadcast %3 : vector<1x96xf32> to vector<16x96xf32>
    %5 = arith.addf %2, %4 : vector<16x96xf32>
    %6 = tpu.iota {dimensions = array<i32: 1>} : vector<1x8xi32>
    %c2_i32 = arith.constant 2 : i32
    %7 = vector.broadcast %c2_i32 : i32 to vector<1x8xi32>
    %8 = arith.cmpi slt, %6, %7 : vector<1x8xi32>
    %cst_5 = arith.constant 0.353553385 : f32
    %cst_6 = arith.constant 0.707106769 : f32
    %9 = vector.broadcast %cst_5 : f32 to vector<1x8xf32>
    %10 = vector.broadcast %cst_6 : f32 to vector<1x8xf32>
    %11 = arith.select %8, %9, %10 : vector<1x8xi1>, vector<1x8xf32>
    %12 = tpu.iota {dimensions = array<i32: 0>} : vector<16x16xi32>
    %13 = tpu.iota {dimensions = array<i32: 1>} : vector<16x16xi32>
    %c3_i32 = arith.constant 3 : i32
    %14 = vector.broadcast %c3_i32 : i32 to vector<16x16xi32>
    %15 = arith.shrsi %12, %14 : vector<16x16xi32>
    %c3_i32_7 = arith.constant 3 : i32
    %16 = vector.broadcast %c3_i32_7 : i32 to vector<16x16xi32>
    %17 = arith.shrsi %13, %16 : vector<16x16xi32>
    %18 = arith.cmpi eq, %15, %17 : vector<16x16xi32>
    %19 = arith.cmpi sle, %13, %12 : vector<16x16xi32>
    %20 = arith.andi %19, %18 : vector<16x16xi1>
    %c0_8 = arith.constant 0 : index
    %c0_9 = arith.constant 0 : index
    %21 = vector.load %arg2[%c0_8, %c0_9] : memref<1x16xf32, #tpu.memory_space<vmem>>, vector<1x16xf32>
    %22 = vector.shape_cast %21 : vector<1x16xf32> to vector<1x16xf32>
    %23 = vector.broadcast %22 : vector<1x16xf32> to vector<16x16xf32>
    %cst_10 = arith.constant -1.000000e+30 : f32
    %24 = vector.broadcast %cst_10 : f32 to vector<16x16xf32>
    %25 = arith.select %20, %23, %24 : vector<16x16xi1>, vector<16x16xf32>
    %c0_11 = arith.constant 0 : index
    %c0_12 = arith.constant 0 : index
    %26 = vector.load %arg6[%c0_11, %c0_12] : memref<1x32xf32, #tpu.memory_space<vmem>>, vector<1x32xf32>
    %27 = vector.extract_strided_slice %5 {offsets = [0, 0], sizes = [16, 8], strides = [1, 1]} : vector<16x96xf32> to vector<16x8xf32>
    %28 = vector.extract_strided_slice %5 {offsets = [0, 8], sizes = [16, 8], strides = [1, 1]} : vector<16x96xf32> to vector<16x8xf32>
    %29 = vector.broadcast %11 : vector<1x8xf32> to vector<16x8xf32>
    %30 = arith.mulf %28, %29 : vector<16x8xf32>
    %31 = vector.extract_strided_slice %5 {offsets = [0, 16], sizes = [16, 8], strides = [1, 1]} : vector<16x96xf32> to vector<16x8xf32>
    %cst_13 = arith.constant dense<0.000000e+00> : vector<16x16xf32>
    %32 = tpu.matmul %27, %30, %cst_13 {dimension_numbers = #tpu.dot_dimension_numbers<[1], [1], [0], [0], [0, 0, 1, 0], [], []>} : vector<16x8xf32>, vector<16x8xf32>, vector<16x16xf32> -> vector<16x16xf32>
    %33 = arith.addf %32, %25 : vector<16x16xf32>
    %cst_14 = arith.constant dense<0xFF800000> : vector<16xf32>
    %34 = vector.multi_reduction <maximumf>, %33, %cst_14 [1] : vector<16x16xf32> to vector<16xf32>
    %35 = vector.shape_cast %34 : vector<16xf32> to vector<16x1xf32>
    %36 = vector.broadcast %35 : vector<16x1xf32> to vector<16x16xf32>
    %37 = arith.subf %33, %36 : vector<16x16xf32>
    %38 = math.exp %37 : vector<16x16xf32>
    %cst_15 = arith.constant dense<0.000000e+00> : vector<16xf32>
    %39 = vector.multi_reduction <add>, %38, %cst_15 [1] : vector<16x16xf32> to vector<16xf32>
    %40 = vector.shape_cast %39 : vector<16xf32> to vector<16x1xf32>
    %41 = tpu.reciprocal %40 {approx = true} : vector<16x1xf32> -> vector<16x1xf32>
    %42 = vector.broadcast %41 : vector<16x1xf32> to vector<16x16xf32>
    %43 = arith.mulf %38, %42 : vector<16x16xf32>
    %cst_16 = arith.constant dense<0.000000e+00> : vector<16x8xf32>
    %44 = tpu.matmul %43, %31, %cst_16 {dimension_numbers = #tpu.dot_dimension_numbers<[1], [0], [0], [1], [0, 0, 1, 1], [], []>} : vector<16x16xf32>, vector<16x8xf32>, vector<16x8xf32> -> vector<16x8xf32>
    %c0_17 = arith.constant 0 : index
    %c0_18 = arith.constant 0 : index
    %45 = vector.load %arg5[%c0_17, %c0_18] : memref<32x32xf32, #tpu.memory_space<vmem>>, vector<8x32xf32>
    %cst_19 = arith.constant dense<0.000000e+00> : vector<16x32xf32>
    %46 = tpu.matmul %44, %45, %cst_19 {dimension_numbers = #tpu.dot_dimension_numbers<[1], [0], [0], [1], [0, 0, 1, 1], [], []>} : vector<16x8xf32>, vector<8x32xf32>, vector<16x32xf32> -> vector<16x32xf32>
    %47 = vector.broadcast %26 : vector<1x32xf32> to vector<16x32xf32>
    %48 = arith.addf %47, %46 : vector<16x32xf32>
    %49 = vector.extract_strided_slice %5 {offsets = [0, 24], sizes = [16, 8], strides = [1, 1]} : vector<16x96xf32> to vector<16x8xf32>
    %50 = vector.extract_strided_slice %5 {offsets = [0, 32], sizes = [16, 8], strides = [1, 1]} : vector<16x96xf32> to vector<16x8xf32>
    %51 = vector.broadcast %11 : vector<1x8xf32> to vector<16x8xf32>
    %52 = arith.mulf %50, %51 : vector<16x8xf32>
    %53 = vector.extract_strided_slice %5 {offsets = [0, 40], sizes = [16, 8], strides = [1, 1]} : vector<16x96xf32> to vector<16x8xf32>
    %cst_20 = arith.constant dense<0.000000e+00> : vector<16x16xf32>
    %54 = tpu.matmul %49, %52, %cst_20 {dimension_numbers = #tpu.dot_dimension_numbers<[1], [1], [0], [0], [0, 0, 1, 0], [], []>} : vector<16x8xf32>, vector<16x8xf32>, vector<16x16xf32> -> vector<16x16xf32>
    %55 = arith.addf %54, %25 : vector<16x16xf32>
    %cst_21 = arith.constant dense<0xFF800000> : vector<16xf32>
    %56 = vector.multi_reduction <maximumf>, %55, %cst_21 [1] : vector<16x16xf32> to vector<16xf32>
    %57 = vector.shape_cast %56 : vector<16xf32> to vector<16x1xf32>
    %58 = vector.broadcast %57 : vector<16x1xf32> to vector<16x16xf32>
    %59 = arith.subf %55, %58 : vector<16x16xf32>
    %60 = math.exp %59 : vector<16x16xf32>
    %cst_22 = arith.constant dense<0.000000e+00> : vector<16xf32>
    %61 = vector.multi_reduction <add>, %60, %cst_22 [1] : vector<16x16xf32> to vector<16xf32>
    %62 = vector.shape_cast %61 : vector<16xf32> to vector<16x1xf32>
    %63 = tpu.reciprocal %62 {approx = true} : vector<16x1xf32> -> vector<16x1xf32>
    %64 = vector.broadcast %63 : vector<16x1xf32> to vector<16x16xf32>
    %65 = arith.mulf %60, %64 : vector<16x16xf32>
    %cst_23 = arith.constant dense<0.000000e+00> : vector<16x8xf32>
    %66 = tpu.matmul %65, %53, %cst_23 {dimension_numbers = #tpu.dot_dimension_numbers<[1], [0], [0], [1], [0, 0, 1, 1], [], []>} : vector<16x16xf32>, vector<16x8xf32>, vector<16x8xf32> -> vector<16x8xf32>
    %c8 = arith.constant 8 : index
    %c0_24 = arith.constant 0 : index
    %67 = vector.load %arg5[%c8, %c0_24] : memref<32x32xf32, #tpu.memory_space<vmem>>, vector<8x32xf32>
    %cst_25 = arith.constant dense<0.000000e+00> : vector<16x32xf32>
    %68 = tpu.matmul %66, %67, %cst_25 {dimension_numbers = #tpu.dot_dimension_numbers<[1], [0], [0], [1], [0, 0, 1, 1], [], []>} : vector<16x8xf32>, vector<8x32xf32>, vector<16x32xf32> -> vector<16x32xf32>
    %69 = arith.addf %48, %68 : vector<16x32xf32>
    %70 = vector.extract_strided_slice %5 {offsets = [0, 48], sizes = [16, 8], strides = [1, 1]} : vector<16x96xf32> to vector<16x8xf32>
    %71 = vector.extract_strided_slice %5 {offsets = [0, 56], sizes = [16, 8], strides = [1, 1]} : vector<16x96xf32> to vector<16x8xf32>
    %72 = vector.broadcast %11 : vector<1x8xf32> to vector<16x8xf32>
    %73 = arith.mulf %71, %72 : vector<16x8xf32>
    %74 = vector.extract_strided_slice %5 {offsets = [0, 64], sizes = [16, 8], strides = [1, 1]} : vector<16x96xf32> to vector<16x8xf32>
    %cst_26 = arith.constant dense<0.000000e+00> : vector<16x16xf32>
    %75 = tpu.matmul %70, %73, %cst_26 {dimension_numbers = #tpu.dot_dimension_numbers<[1], [1], [0], [0], [0, 0, 1, 0], [], []>} : vector<16x8xf32>, vector<16x8xf32>, vector<16x16xf32> -> vector<16x16xf32>
    %76 = arith.addf %75, %25 : vector<16x16xf32>
    %cst_27 = arith.constant dense<0xFF800000> : vector<16xf32>
    %77 = vector.multi_reduction <maximumf>, %76, %cst_27 [1] : vector<16x16xf32> to vector<16xf32>
    %78 = vector.shape_cast %77 : vector<16xf32> to vector<16x1xf32>
    %79 = vector.broadcast %78 : vector<16x1xf32> to vector<16x16xf32>
    %80 = arith.subf %76, %79 : vector<16x16xf32>
    %81 = math.exp %80 : vector<16x16xf32>
    %cst_28 = arith.constant dense<0.000000e+00> : vector<16xf32>
    %82 = vector.multi_reduction <add>, %81, %cst_28 [1] : vector<16x16xf32> to vector<16xf32>
    %83 = vector.shape_cast %82 : vector<16xf32> to vector<16x1xf32>
    %84 = tpu.reciprocal %83 {approx = true} : vector<16x1xf32> -> vector<16x1xf32>
    %85 = vector.broadcast %84 : vector<16x1xf32> to vector<16x16xf32>
    %86 = arith.mulf %81, %85 : vector<16x16xf32>
    %cst_29 = arith.constant dense<0.000000e+00> : vector<16x8xf32>
    %87 = tpu.matmul %86, %74, %cst_29 {dimension_numbers = #tpu.dot_dimension_numbers<[1], [0], [0], [1], [0, 0, 1, 1], [], []>} : vector<16x16xf32>, vector<16x8xf32>, vector<16x8xf32> -> vector<16x8xf32>
    %c16 = arith.constant 16 : index
    %c0_30 = arith.constant 0 : index
    %88 = vector.load %arg5[%c16, %c0_30] : memref<32x32xf32, #tpu.memory_space<vmem>>, vector<8x32xf32>
    %cst_31 = arith.constant dense<0.000000e+00> : vector<16x32xf32>
    %89 = tpu.matmul %87, %88, %cst_31 {dimension_numbers = #tpu.dot_dimension_numbers<[1], [0], [0], [1], [0, 0, 1, 1], [], []>} : vector<16x8xf32>, vector<8x32xf32>, vector<16x32xf32> -> vector<16x32xf32>
    %90 = arith.addf %69, %89 : vector<16x32xf32>
    %91 = vector.extract_strided_slice %5 {offsets = [0, 72], sizes = [16, 8], strides = [1, 1]} : vector<16x96xf32> to vector<16x8xf32>
    %92 = vector.extract_strided_slice %5 {offsets = [0, 80], sizes = [16, 8], strides = [1, 1]} : vector<16x96xf32> to vector<16x8xf32>
    %93 = vector.broadcast %11 : vector<1x8xf32> to vector<16x8xf32>
    %94 = arith.mulf %92, %93 : vector<16x8xf32>
    %95 = vector.extract_strided_slice %5 {offsets = [0, 88], sizes = [16, 8], strides = [1, 1]} : vector<16x96xf32> to vector<16x8xf32>
    %cst_32 = arith.constant dense<0.000000e+00> : vector<16x16xf32>
    %96 = tpu.matmul %91, %94, %cst_32 {dimension_numbers = #tpu.dot_dimension_numbers<[1], [1], [0], [0], [0, 0, 1, 0], [], []>} : vector<16x8xf32>, vector<16x8xf32>, vector<16x16xf32> -> vector<16x16xf32>
    %97 = arith.addf %96, %25 : vector<16x16xf32>
    %cst_33 = arith.constant dense<0xFF800000> : vector<16xf32>
    %98 = vector.multi_reduction <maximumf>, %97, %cst_33 [1] : vector<16x16xf32> to vector<16xf32>
    %99 = vector.shape_cast %98 : vector<16xf32> to vector<16x1xf32>
    %100 = vector.broadcast %99 : vector<16x1xf32> to vector<16x16xf32>
    %101 = arith.subf %97, %100 : vector<16x16xf32>
    %102 = math.exp %101 : vector<16x16xf32>
    %cst_34 = arith.constant dense<0.000000e+00> : vector<16xf32>
    %103 = vector.multi_reduction <add>, %102, %cst_34 [1] : vector<16x16xf32> to vector<16xf32>
    %104 = vector.shape_cast %103 : vector<16xf32> to vector<16x1xf32>
    %105 = tpu.reciprocal %104 {approx = true} : vector<16x1xf32> -> vector<16x1xf32>
    %106 = vector.broadcast %105 : vector<16x1xf32> to vector<16x16xf32>
    %107 = arith.mulf %102, %106 : vector<16x16xf32>
    %cst_35 = arith.constant dense<0.000000e+00> : vector<16x8xf32>
    %108 = tpu.matmul %107, %95, %cst_35 {dimension_numbers = #tpu.dot_dimension_numbers<[1], [0], [0], [1], [0, 0, 1, 1], [], []>} : vector<16x16xf32>, vector<16x8xf32>, vector<16x8xf32> -> vector<16x8xf32>
    %c24 = arith.constant 24 : index
    %c0_36 = arith.constant 0 : index
    %109 = vector.load %arg5[%c24, %c0_36] : memref<32x32xf32, #tpu.memory_space<vmem>>, vector<8x32xf32>
    %cst_37 = arith.constant dense<0.000000e+00> : vector<16x32xf32>
    %110 = tpu.matmul %108, %109, %cst_37 {dimension_numbers = #tpu.dot_dimension_numbers<[1], [0], [0], [1], [0, 0, 1, 1], [], []>} : vector<16x8xf32>, vector<8x32xf32>, vector<16x32xf32> -> vector<16x32xf32>
    %111 = arith.addf %90, %110 : vector<16x32xf32>
    %c0_38 = arith.constant 0 : index
    %c0_39 = arith.constant 0 : index
    %112 = vector.load %arg7[%c0_38, %c0_39] : memref<16x32xf32, #tpu.memory_space<vmem>>, vector<16x32xf32>
    tpu.vector_store %arg7[%c0_38, %c0_39], %111 {strides = array<i32>} : memref<16x32xf32, #tpu.memory_space<vmem>>, vector<16x32xf32>,
    return
  }
  func.func @transform_0(%arg0: i32) -> (i32, i32) {
    %c0_i32 = arith.constant 0 : i32
    %c0_i32_0 = arith.constant 0 : i32
    %c0_i32_1 = arith.constant 0 : i32
    return %c0_i32, %c0_i32_0 : i32, i32
  }
  func.func @transform_1(%arg0: i32) -> (i32, i32) {
    %c0_i32 = arith.constant 0 : i32
    %c0_i32_0 = arith.constant 0 : i32
    %c0_i32_1 = arith.constant 0 : i32
    return %c0_i32, %c0_i32_0 : i32, i32
  }
  func.func @transform_2(%arg0: i32) -> (i32, i32) {
    %c0_i32 = arith.constant 0 : i32
    %c0_i32_0 = arith.constant 0 : i32
    %c0_i32_1 = arith.constant 0 : i32
    return %c0_i32, %c0_i32_0 : i32, i32
  }
  func.func @transform_3(%arg0: i32) -> (i32, i32) {
    %c0_i32 = arith.constant 0 : i32
    %c0_i32_0 = arith.constant 0 : i32
    %c0_i32_1 = arith.constant 0 : i32
    return %c0_i32, %c0_i32_0 : i32, i32
  }
  func.func @transform_4(%arg0: i32) -> (i32, i32) {
    %c0_i32 = arith.constant 0 : i32
    %c0_i32_0 = arith.constant 0 : i32
    %c0_i32_1 = arith.constant 0 : i32
    return %c0_i32, %c0_i32_0 : i32, i32
  }
  func.func @transform_5(%arg0: i32) -> (i32, i32) {
    %c0_i32 = arith.constant 0 : i32
    %c0_i32_0 = arith.constant 0 : i32
    %c0_i32_1 = arith.constant 0 : i32
    return %c0_i32, %c0_i32_0 : i32, i32
  }
  func.func @transform_6(%arg0: i32) -> (i32, i32) {
    %c0_i32 = arith.constant 0 : i32
    %c0_i32_0 = arith.constant 0 : i32
    %c0_i32_1 = arith.constant 0 : i32
    return %c0_i32, %c0_i32_0 : i32, i32
  }
}

</mosaic_0001>

<llo_original>
// kernel: tpu_custom_call.1
$region0: #{tpu_custom_call.1}
  #allocation0 [shape = 'u32[]', space=smem, size = 0x4, offset = 0x4, fixed_abs, tag = 'smem constant byte address 0x4 - core index']
  #allocation1 [shape = 'u32[144,128]{1,0:T(1,128)}', space=vmem, size = 0x12000, scoped, tag = 'internal scratch']
  %s0 = inlined_call_operand.hbm [shape: f32[16,32], index: 0, kind: input, shape index: {}]
  %s1 = inlined_call_operand.vmem [shape: f32[1,16], index: 1, kind: input, shape index: {}]
  %s2 = inlined_call_operand.hbm [shape: f32[32,96], index: 2, kind: input, shape index: {}]
  %s3 = inlined_call_operand.vmem [shape: f32[1,96], index: 3, kind: input, shape index: {}]
  %s4 = inlined_call_operand.hbm [shape: f32[32,32], index: 4, kind: input, shape index: {}]
  %s5 = inlined_call_operand.vmem [shape: f32[1,32], index: 5, kind: input, shape index: {}]
  %s6 = inlined_call_operand.hbm [shape: f32[16,32], index: 6, kind: output, shape index: {}]
  %s7 = sld [smem:[#allocation0]]
  $region46: #{tpu_custom_call.1} parent=0
    _
  %s9 = ssub.s32 1, %s7
  %s10 = scalar_select 0, %s9, %s7
  $region1: #{tpu_custom_call.1} parent=0
    #allocation2 [shape = 'u8[8192]{0}', space=vmem, size = 0x2000, scoped, tag = 'input window, operand 0, single buffered']
    #allocation3 [shape = 's32[1]{0}', space=sflag, size = 0x4, scoped, tag = 'scoped memory for tpu_custom_call.1']
    #allocation4 [shape = 's32[1]{0}', space=sflag, size = 0x4, scoped, tag = 'scoped memory for tpu_custom_call.1']
    #allocation5 [shape = 'u8[16384]{0}', space=vmem, size = 0x4000, scoped, tag = 'input window, operand 2, single buffered']
    #allocation6 [shape = 's32[1]{0}', space=sflag, size = 0x4, scoped, tag = 'scoped memory for tpu_custom_call.1']
    #allocation7 [shape = 'u8[16384]{0}', space=vmem, size = 0x4000, scoped, tag = 'input window, operand 4, single buffered']
    #allocation8 [shape = 'u8[8192]{0}', space=vmem, size = 0x2000, scoped, tag = 'output window, operand 0, single buffered']
    %11 = vsyncpa [#allocation3], 0
    %12 = vsyncpa [#allocation6], 0
    %13 = vsyncpa [#allocation4], 0
    // Predicated region
    $region2: #{tpu_custom_call.1} parent=1 // pred_check
      _
    $region3: #{tpu_custom_call.1} parent=1 // pred_check_branch
      %15 = sbr.rel (0) target = $region5
    $region4: #{tpu_custom_call.1} parent=1 // pred_region
      %s17 = ssub.s32 256, 256
      %18 = vsyncadd [#allocation3], %s17
      %s19 = sshll.u32 [#allocation2], 4
      %s20 = int_to_ptr.vmem [resolvable:$true] %s19
      %25 = dma.hbm_to_vmem [thread:$0]  %s0, 256, %s20, [#allocation3], 128, 128, 8
    $region5: #{tpu_custom_call.1} parent=1 // pred_fallthru
      _
    // Predicated region
    $region6: #{tpu_custom_call.1} parent=1 // pred_check
      _
    $region7: #{tpu_custom_call.1} parent=1 // pred_check_branch
      %27 = sbr.rel (0) target = $region9
    $region8: #{tpu_custom_call.1} parent=1 // pred_region
      _
    $region9: #{tpu_custom_call.1} parent=1 // pred_fallthru
      _
    // Predicated region
    $region10: #{tpu_custom_call.1} parent=1 // pred_check
      _
    $region11: #{tpu_custom_call.1} parent=1 // pred_check_branch
      %29 = sbr.rel (0) target = $region13
    $region12: #{tpu_custom_call.1} parent=1 // pred_region
      %s31 = ssub.s32 512, 512
      %32 = vsyncadd [#allocation6], %s31
      %s33 = sshll.u32 [#allocation5], 4
      %s34 = int_to_ptr.vmem [resolvable:$true] %s33
      %39 = dma.hbm_to_vmem [thread:$0]  %s2, 512, %s34, [#allocation6], 128, 128, 8
    $region13: #{tpu_custom_call.1} parent=1 // pred_fallthru
      _
    // Predicated region
    $region14: #{tpu_custom_call.1} parent=1 // pred_check
      _
    $region15: #{tpu_custom_call.1} parent=1 // pred_check_branch
      %41 = sbr.rel (0) target = $region17
    $region16: #{tpu_custom_call.1} parent=1 // pred_region
      _
    $region17: #{tpu_custom_call.1} parent=1 // pred_fallthru
      _
    // Predicated region
    $region18: #{tpu_custom_call.1} parent=1 // pred_check
      _
    $region19: #{tpu_custom_call.1} parent=1 // pred_check_branch
      %43 = sbr.rel (0) target = $region21
    $region20: #{tpu_custom_call.1} parent=1 // pred_region
      %s45 = ssub.s32 512, 512
      %46 = vsyncadd [#allocation6], %s45
      %s47 = sshll.u32 [#allocation7], 4
      %s48 = int_to_ptr.vmem [resolvable:$true] %s47
      %53 = dma.hbm_to_vmem [thread:$0]  %s4, 512, %s48, [#allocation6], 128, 128, 8
    $region21: #{tpu_custom_call.1} parent=1 // pred_fallthru
      _
    // Predicated region
    $region22: #{tpu_custom_call.1} parent=1 // pred_check
      _
    $region23: #{tpu_custom_call.1} parent=1 // pred_check_branch
      %55 = sbr.rel (0) target = $region25
    $region24: #{tpu_custom_call.1} parent=1 // pred_region
      _
    $region25: #{tpu_custom_call.1} parent=1 // pred_fallthru
      _
    // Predicated region
    $region26: #{tpu_custom_call.1} parent=1 // pred_check
      _
    $region27: #{tpu_custom_call.1} parent=1 // pred_check_branch
      %57 = sbr.rel (0) target = $region29
    $region28: #{tpu_custom_call.1} parent=1 // pred_region
      %58 = dma.done [#allocation3], 256
    $region29: #{tpu_custom_call.1} parent=1 // pred_fallthru
      _
    // Predicated region
    $region30: #{tpu_custom_call.1} parent=1 // pred_check
      _
    $region31: #{tpu_custom_call.1} parent=1 // pred_check_branch
      %60 = sbr.rel (0) target = $region33
    $region32: #{tpu_custom_call.1} parent=1 // pred_region
      %61 = dma.done [#allocation6], 512
    $region33: #{tpu_custom_call.1} parent=1 // pred_fallthru
      _
    // Predicated region
    $region34: #{tpu_custom_call.1} parent=1 // pred_check
      _
    $region35: #{tpu_custom_call.1} parent=1 // pred_check_branch
      %63 = sbr.rel (0) target = $region37
    $region36: #{tpu_custom_call.1} parent=1 // pred_region
      %64 = dma.done [#allocation6], 512
    $region37: #{tpu_custom_call.1} parent=1 // pred_fallthru
      _
    %v65 = vld [vmem:[#allocation2] sm:$0xff]
    %v66 = vld [vmem:[#allocation2 + $0x8] sm:$0xff]
    %v67 = vld [vmem:[#allocation5] sm:$0xff]
    %v68 = vld [vmem:[#allocation5 + $0x8] sm:$0xff]
    %v69 = vld [vmem:[#allocation5 + $0x10] sm:$0xff]
    %v70 = vld [vmem:[#allocation5 + $0x18] sm:$0xff]
    %v71 = vld [vmem:[%s3] sm:$0x1]
    %v73 = vlaneseq
    %v74 = vshrl.u32 %v73, 7
    %v75 = vsub.s32 0, %v74
    %v76 = vrot.slane %v71, %v75
    %vm78 = vcmask 261120
    %v80 = vsel %vm78, %v65, 0
    %v83 = vsel %vm78, %v66, 0
    %85 = vmatprep.subr.mxu0 0.0
    %86 = vmatpush1.msra.mxu0 0.0
    %87 = vmatprep.subr.mxu0 0.0
    %88 = vmatpush1.msra.mxu0 0.0
    %89 = vmatprep.subr.mxu0 0.0
    %90 = vmatpush1.msra.mxu0 0.0
    %91 = vmatprep.subr.mxu0 0.0
    %92 = vmatpush1.msra.mxu0 0.0
    %93 = vmatprep.subr.mxu0 0.0
    %94 = vmatpush1.msra.mxu0 0.0
    %95 = vmatprep.subr.mxu0 0.0
    %96 = vmatpush1.msra.mxu0 0.0
    %97 = vmatprep.subr.mxu0 0.0
    %98 = vmatpush1.msra.mxu0 0.0
    %99 = vmatprep.subr.mxu0 0.0
    %100 = vmatpush1.msra.mxu0 0.0
    %101 = vmatprep.subr.mxu0 0.0
    %102 = vmatpush1.msra.mxu0 0.0
    %103 = vmatprep.subr.mxu0 0.0
    %104 = vmatpush1.msra.mxu0 0.0
    %105 = vmatprep.subr.mxu0 0.0
    %106 = vmatpush1.msra.mxu0 0.0
    %107 = vmatprep.subr.mxu0 0.0
    %108 = vmatpush1.msra.mxu0 0.0
    %109 = vmatprep.subr.mxu0 0.0
    %110 = vmatpush1.msra.mxu0 %v70
    %111 = vmatprep.subr.mxu0 0.0
    %112 = vmatpush1.msra.mxu0 %v69
    %113 = vmatprep.subr.mxu0 0.0
    %114 = vmatpush1.msra.mxu0 %v68
    %115 = vmatprep.subr.mxu0 0.0
    %116 = vmatpush1.msra.mxu0 %v67
    %117 = vmatprep.subr.mxu0 0.0
    %118 = vmatpush2.msra.mxu0 0.0
    %119 = vmatprep.subr.mxu0 0.0
    %120 = vmatpush2.msra.mxu0 0.0
    %121 = vmatprep.subr.mxu0 0.0
    %122 = vmatpush2.msra.mxu0 0.0
    %123 = vmatprep.subr.mxu0 0.0
    %124 = vmatpush2.msra.mxu0 0.0
    %125 = vmatprep.subr.mxu0 0.0
    %126 = vmatpush2.msra.mxu0 0.0
    %127 = vmatprep.subr.mxu0 0.0
    %128 = vmatpush2.msra.mxu0 0.0
    %129 = vmatprep.subr.mxu0 0.0
    %130 = vmatpush2.msra.mxu0 0.0
    %131 = vmatprep.subr.mxu0 0.0
    %132 = vmatpush2.msra.mxu0 0.0
    %133 = vmatprep.subr.mxu0 0.0
    %134 = vmatpush2.msra.mxu0 0.0
    %135 = vmatprep.subr.mxu0 0.0
    %136 = vmatpush2.msra.mxu0 0.0
    %137 = vmatprep.subr.mxu0 0.0
    %138 = vmatpush2.msra.mxu0 0.0
    %139 = vmatprep.subr.mxu0 0.0
    %140 = vmatpush2.msra.mxu0 0.0
    %141 = vmatprep.subr.mxu0 0.0
    %142 = vmatpush2.msra.mxu0 0.0
    %143 = vmatprep.subr.mxu0 0.0
    %144 = vmatpush2.msra.mxu0 0.0
    %145 = vmatprep.subr.mxu0 0.0
    %146 = vmatpush2.msra.mxu0 0.0
    %147 = vmatprep.subr.mxu0 0.0
    %148 = vmatpush2.msra.mxu0 0.0
    %149 = vmatprep.mubr.f32.mxu0 0.0
    %150 = vmatmul.mubr.f32.gmra.mxu0 %v80
    %v151 = vpop.f32.mrf.mxu0
    %v152 = vadd.f32 %v76, %v151
    %v153 = vpop.f32.mrf.mxu0
    %154 = vmatprep.mubr.f32.mxu0 0.0
    %155 = vmatmul.mubr.f32.gmra.mxu0 %v83
    %v156 = vpop.f32.mrf.mxu0
    %v157 = vadd.f32 %v76, %v156
    %v158 = vpop.f32.mrf.mxu0
    %159 = vdwg.mxu0
    %v160 = vlaneseq
    %v161 = vand.u32 %v160, 127
    %vm162 = vcmp.lt.s32.totalorder %v161, 2
    %v163 = vsel %vm162, 0.35355338, 0.70710677
    %v164 = vlaneseq
    %v165 = vshrl.u32 %v164, 7
    %v166 = vadd.s32 %v165, 8
    %v167 = vshra.s32 %v165, 3
    %v168 = vshra.s32 %v166, 3
    %v169 = vshra.s32 %v161, 3
    %vm170 = vcmp.eq.s32.totalorder %v167, %v169
    %vm171 = vcmp.eq.s32.totalorder %v168, %v169
    %vm172 = vcmp.le.s32.totalorder %v161, %v165
    %vm173 = vcmp.le.s32.totalorder %v161, %v166
    %vm174 = vmand %vm172, %vm170
    %vm175 = vmand %vm173, %vm171
    %v176 = vld [vmem:[%s1] sm:$0x1]
    %v178 = vlaneseq
    %v179 = vshrl.u32 %v178, 7
    %v180 = vsub.s32 0, %v179
    %v181 = vrot.slane %v176, %v180
    %v183 = vsel %vm174, %v181, -1e+30
    %v184 = vsel %vm175, %v181, -1e+30
    %v185 = vld [vmem:[%s5] sm:$0x1]
    %187 = vrot.lane.b32.xlu0 %v163, 8
    %v188 = vpop.permute.xlu0 %187
    %v190 = vmul.f32 %v152, %v188
    %v191 = vmul.f32 %v157, %v188
    %194 = vrot.lane.b32.xlu0 %v190, 120
    %v195 = vpop.permute.xlu0 %194
    %196 = vrot.lane.b32.xlu0 %v191, 120
    %v197 = vpop.permute.xlu0 %196
    %vm198 = vcmask 64512
    %v200 = vsel %vm198, %v152, 0
    %v203 = vsel %vm198, %v157, 0
    %v205 = vsel %vm198, %v195, 0
    %v207 = vsel %vm198, %v197, 0
    %209 = vmatprep.subr.mxu0 0.0
    %210 = vmatpush1.xpose.msra.mxu0 0.0
    %211 = vmatprep.subr.mxu0 0.0
    %212 = vmatpush1.xpose.msra.mxu0 0.0
    %213 = vmatprep.subr.mxu0 0.0
    %214 = vmatpush1.xpose.msra.mxu0 0.0
    %215 = vmatprep.subr.mxu0 0.0
    %216 = vmatpush1.xpose.msra.mxu0 0.0
    %217 = vmatprep.subr.mxu0 0.0
    %218 = vmatpush1.xpose.msra.mxu0 0.0
    %219 = vmatprep.subr.mxu0 0.0
    %220 = vmatpush1.xpose.msra.mxu0 0.0
    %221 = vmatprep.subr.mxu0 0.0
    %222 = vmatpush1.xpose.msra.mxu0 0.0
    %223 = vmatprep.subr.mxu0 0.0
    %224 = vmatpush1.xpose.msra.mxu0 0.0
    %225 = vmatprep.subr.mxu0 0.0
    %226 = vmatpush1.xpose.msra.mxu0 0.0
    %227 = vmatprep.subr.mxu0 0.0
    %228 = vmatpush1.xpose.msra.mxu0 0.0
    %229 = vmatprep.subr.mxu0 0.0
    %230 = vmatpush1.xpose.msra.mxu0 0.0
    %231 = vmatprep.subr.mxu0 0.0
    %232 = vmatpush1.xpose.msra.mxu0 0.0
    %233 = vmatprep.subr.mxu0 0.0
    %234 = vmatpush1.xpose.msra.mxu0 0.0
    %235 = vmatprep.subr.mxu0 0.0
    %236 = vmatpush1.xpose.msra.mxu0 0.0
    %237 = vmatprep.subr.mxu0 0.0
    %238 = vmatpush1.xpose.msra.mxu0 %v207
    %239 = vmatprep.subr.mxu0 0.0
    %240 = vmatpush1.xpose.msra.mxu0 %v205
    %241 = vmatprep.subr.mxu0 0.0
    %242 = vmatpush2.xpose.msra.mxu0 0.0
    %243 = vmatprep.subr.mxu0 0.0
    %244 = vmatpush2.xpose.msra.mxu0 0.0
    %245 = vmatprep.subr.mxu0 0.0
    %246 = vmatpush2.xpose.msra.mxu0 0.0
    %247 = vmatprep.subr.mxu0 0.0
    %248 = vmatpush2.xpose.msra.mxu0 0.0
    %249 = vmatprep.subr.mxu0 0.0
    %250 = vmatpush2.xpose.msra.mxu0 0.0
    %251 = vmatprep.subr.mxu0 0.0
    %252 = vmatpush2.xpose.msra.mxu0 0.0
    %253 = vmatprep.subr.mxu0 0.0
    %254 = vmatpush2.xpose.msra.mxu0 0.0
    %255 = vmatprep.subr.mxu0 0.0
    %256 = vmatpush2.xpose.msra.mxu0 0.0
    %257 = vmatprep.subr.mxu0 0.0
    %258 = vmatpush2.xpose.msra.mxu0 0.0
    %259 = vmatprep.subr.mxu0 0.0
    %260 = vmatpush2.xpose.msra.mxu0 0.0
    %261 = vmatprep.subr.mxu0 0.0
    %262 = vmatpush2.xpose.msra.mxu0 0.0
    %263 = vmatprep.subr.mxu0 0.0
    %264 = vmatpush2.xpose.msra.mxu0 0.0
    %265 = vmatprep.subr.mxu0 0.0
    %266 = vmatpush2.xpose.msra.mxu0 0.0
    %267 = vmatprep.subr.mxu0 0.0
    %268 = vmatpush2.xpose.msra.mxu0 0.0
    %269 = vmatprep.subr.mxu0 0.0
    %270 = vmatpush2.xpose.msra.mxu0 0.0
    %271 = vmatprep.subr.mxu0 0.0
    %272 = vmatpush2.xpose.msra.mxu0 0.0
    %273 = vmatprep.mubr.f32.mxu0 0.0
    %274 = vmatmul.mubr.f32.gmra.mxu0 %v200
    %v275 = vpop.f32.mrf.mxu0
    %v276 = vadd.f32 %v183, %v275
    %v277 = vpop.f32.mrf.mxu0
    %278 = vmatprep.mubr.f32.mxu0 0.0
    %279 = vmatmul.mubr.f32.gmra.mxu0 %v203
    %v280 = vpop.f32.mrf.mxu0
    %v281 = vadd.f32 %v184, %v280
    %v282 = vpop.f32.mrf.mxu0
    %283 = vdwg.mxu0
    %vm284 = vcmask 130048
    %v285 = vsel %vm284, %v276, -inf
    %286 = vmax.xlane.f32.xlu0 %v285
    %v287 = vpop.xlane.xlu0 %286
    %v288 = vsel %vm284, %v281, -inf
    %289 = vmax.xlane.f32.xlu0 %v288
    %v290 = vpop.xlane.xlu0 %289
    %v291 = vsub.f32 %v276, %v287
    %v292 = vsub.f32 %v281, %v290
    %v293 = vmul.f32 %v291, 1.442695
    %v294 = vpow.pop %v293
    %v295 = vmul.f32 %v292, 1.442695
    %v296 = vpow.pop %v295
    %v297 = vsel %vm284, %v294, 0.0
    %298 = vadd.xlane.f32.xlu0 %v297
    %v299 = vpop.xlane.xlu0 %298
    %v300 = vsel %vm284, %v296, 0.0
    %301 = vadd.xlane.f32.xlu0 %v300
    %v302 = vpop.xlane.xlu0 %301
    %v303 = vrcp.pop %v299
    %v304 = vrcp.pop %v302
    %v305 = vmul.f32 %v294, %v303
    %v306 = vmul.f32 %v296, %v304
    %307 = vrot.lane.b32.xlu0 %v152, 112
    %v308 = vpop.permute.xlu0 %307
    %309 = vrot.lane.b32.xlu0 %v157, 112
    %v310 = vpop.permute.xlu0 %309
    %v314 = vsel %vm284, %v305, 0
    %v317 = vsel %vm284, %v306, 0
    %319 = vmatprep.subr.mxu0 0.0
    %320 = vmatpush1.msra.mxu0 0.0
    %321 = vmatprep.subr.mxu0 0.0
    %322 = vmatpush1.msra.mxu0 0.0
    %323 = vmatprep.subr.mxu0 0.0
    %324 = vmatpush1.msra.mxu0 0.0
    %325 = vmatprep.subr.mxu0 0.0
    %326 = vmatpush1.msra.mxu0 0.0
    %327 = vmatprep.subr.mxu0 0.0
    %328 = vmatpush1.msra.mxu0 0.0
    %329 = vmatprep.subr.mxu0 0.0
    %330 = vmatpush1.msra.mxu0 0.0
    %331 = vmatprep.subr.mxu0 0.0
    %332 = vmatpush1.msra.mxu0 0.0
    %333 = vmatprep.subr.mxu0 0.0
    %334 = vmatpush1.msra.mxu0 0.0
    %335 = vmatprep.subr.mxu0 0.0
    %336 = vmatpush1.msra.mxu0 0.0
    %337 = vmatprep.subr.mxu0 0.0
    %338 = vmatpush1.msra.mxu0 0.0
    %339 = vmatprep.subr.mxu0 0.0
    %340 = vmatpush1.msra.mxu0 0.0
    %341 = vmatprep.subr.mxu0 0.0
    %342 = vmatpush1.msra.mxu0 0.0
    %343 = vmatprep.subr.mxu0 0.0
    %344 = vmatpush1.msra.mxu0 0.0
    %345 = vmatprep.subr.mxu0 0.0
    %346 = vmatpush1.msra.mxu0 0.0
    %347 = vmatprep.subr.mxu0 0.0
    %348 = vmatpush1.msra.mxu0 %v310
    %349 = vmatprep.subr.mxu0 0.0
    %350 = vmatpush1.msra.mxu0 %v308
    %351 = vmatprep.subr.mxu0 0.0
    %352 = vmatpush2.msra.mxu0 0.0
    %353 = vmatprep.subr.mxu0 0.0
    %354 = vmatpush2.msra.mxu0 0.0
    %355 = vmatprep.subr.mxu0 0.0
    %356 = vmatpush2.msra.mxu0 0.0
    %357 = vmatprep.subr.mxu0 0.0
    %358 = vmatpush2.msra.mxu0 0.0
    %359 = vmatprep.subr.mxu0 0.0
    %360 = vmatpush2.msra.mxu0 0.0
    %361 = vmatprep.subr.mxu0 0.0
    %362 = vmatpush2.msra.mxu0 0.0
    %363 = vmatprep.subr.mxu0 0.0
    %364 = vmatpush2.msra.mxu0 0.0
    %365 = vmatprep.subr.mxu0 0.0
    %366 = vmatpush2.msra.mxu0 0.0
    %367 = vmatprep.subr.mxu0 0.0
    %368 = vmatpush2.msra.mxu0 0.0
    %369 = vmatprep.subr.mxu0 0.0
    %370 = vmatpush2.msra.mxu0 0.0
    %371 = vmatprep.subr.mxu0 0.0
    %372 = vmatpush2.msra.mxu0 0.0
    %373 = vmatprep.subr.mxu0 0.0
    %374 = vmatpush2.msra.mxu0 0.0
    %375 = vmatprep.subr.mxu0 0.0
    %376 = vmatpush2.msra.mxu0 0.0
    %377 = vmatprep.subr.mxu0 0.0
    %378 = vmatpush2.msra.mxu0 0.0
    %379 = vmatprep.subr.mxu0 0.0
    %380 = vmatpush2.msra.mxu0 0.0
    %381 = vmatprep.subr.mxu0 0.0
    %382 = vmatpush2.msra.mxu0 0.0
    %383 = vmatprep.mubr.f32.mxu0 0.0
    %384 = vmatmul.mubr.f32.gmra.mxu0 %v314
    %v385 = vpop.f32.mrf.mxu0
    %v386 = vadd.f32 0.0, %v385
    %v387 = vpop.f32.mrf.mxu0
    %388 = vmatprep.mubr.f32.mxu0 0.0
    %389 = vmatmul.mubr.f32.gmra.mxu0 %v317
    %v390 = vpop.f32.mrf.mxu0
    %v391 = vadd.f32 0.0, %v390
    %v392 = vpop.f32.mrf.mxu0
    %393 = vdwg.mxu0
    %v394 = vld [vmem:[#allocation7] sm:$0xff]
    %v396 = vsel %vm198, %v386, 0
    %v399 = vsel %vm198, %v391, 0
    %401 = vmatprep.subr.mxu0 0.0
    %402 = vmatpush1.msra.mxu0 0.0
    %403 = vmatprep.subr.mxu0 0.0
    %404 = vmatpush1.msra.mxu0 0.0
    %405 = vmatprep.subr.mxu0 0.0
    %406 = vmatpush1.msra.mxu0 0.0
    %407 = vmatprep.subr.mxu0 0.0
    %408 = vmatpush1.msra.mxu0 0.0
    %409 = vmatprep.subr.mxu0 0.0
    %410 = vmatpush1.msra.mxu0 0.0
    %411 = vmatprep.subr.mxu0 0.0
    %412 = vmatpush1.msra.mxu0 0.0
    %413 = vmatprep.subr.mxu0 0.0
    %414 = vmatpush1.msra.mxu0 0.0
    %415 = vmatprep.subr.mxu0 0.0
    %416 = vmatpush1.msra.mxu0 0.0
    %417 = vmatprep.subr.mxu0 0.0
    %418 = vmatpush1.msra.mxu0 0.0
    %419 = vmatprep.subr.mxu0 0.0
    %420 = vmatpush1.msra.mxu0 0.0
    %421 = vmatprep.subr.mxu0 0.0
    %422 = vmatpush1.msra.mxu0 0.0
    %423 = vmatprep.subr.mxu0 0.0
    %424 = vmatpush1.msra.mxu0 0.0
    %425 = vmatprep.subr.mxu0 0.0
    %426 = vmatpush1.msra.mxu0 0.0
    %427 = vmatprep.subr.mxu0 0.0
    %428 = vmatpush1.msra.mxu0 0.0
    %429 = vmatprep.subr.mxu0 0.0
    %430 = vmatpush1.msra.mxu0 0.0
    %431 = vmatprep.subr.mxu0 0.0
    %432 = vmatpush1.msra.mxu0 %v394
    %433 = vmatprep.subr.mxu0 0.0
    %434 = vmatpush2.msra.mxu0 0.0
    %435 = vmatprep.subr.mxu0 0.0
    %436 = vmatpush2.msra.mxu0 0.0
    %437 = vmatprep.subr.mxu0 0.0
    %438 = vmatpush2.msra.mxu0 0.0
    %439 = vmatprep.subr.mxu0 0.0
    %440 = vmatpush2.msra.mxu0 0.0
    %441 = vmatprep.subr.mxu0 0.0
    %442 = vmatpush2.msra.mxu0 0.0
    %443 = vmatprep.subr.mxu0 0.0
    %444 = vmatpush2.msra.mxu0 0.0
    %445 = vmatprep.subr.mxu0 0.0
    %446 = vmatpush2.msra.mxu0 0.0
    %447 = vmatprep.subr.mxu0 0.0
    %448 = vmatpush2.msra.mxu0 0.0
    %449 = vmatprep.subr.mxu0 0.0
    %450 = vmatpush2.msra.mxu0 0.0
    %451 = vmatprep.subr.mxu0 0.0
    %452 = vmatpush2.msra.mxu0 0.0
    %453 = vmatprep.subr.mxu0 0.0
    %454 = vmatpush2.msra.mxu0 0.0
    %455 = vmatprep.subr.mxu0 0.0
    %456 = vmatpush2.msra.mxu0 0.0
    %457 = vmatprep.subr.mxu0 0.0
    %458 = vmatpush2.msra.mxu0 0.0
    %459 = vmatprep.subr.mxu0 0.0
    %460 = vmatpush2.msra.mxu0 0.0
    %461 = vmatprep.subr.mxu0 0.0
    %462 = vmatpush2.msra.mxu0 0.0
    %463 = vmatprep.subr.mxu0 0.0
    %464 = vmatpush2.msra.mxu0 0.0
    %465 = vmatprep.mubr.f32.mxu0 0.0
    %466 = vmatmul.mubr.f32.gmra.mxu0 %v396
    %v467 = vpop.f32.mrf.mxu0
    %v468 = vadd.f32 0.0, %v467
    %v469 = vpop.f32.mrf.mxu0
    %470 = vmatprep.mubr.f32.mxu0 0.0
    %471 = vmatmul.mubr.f32.gmra.mxu0 %v399
    %v472 = vpop.f32.mrf.mxu0
    %v473 = vadd.f32 0.0, %v472
    %v474 = vpop.f32.mrf.mxu0
    %475 = vdwg.mxu0
    %v477 = vlaneseq
    %v478 = vshrl.u32 %v477, 7
    %v479 = vsub.s32 0, %v478
    %v480 = vrot.slane %v185, %v479
    %v482 = vadd.f32 %v480, %v468
    %v483 = vadd.f32 %v480, %v473
    %484 = vrot.lane.b32.xlu0 %v163, 32
    %v485 = vpop.permute.xlu0 %484
    %v487 = vmul.f32 %v152, %v485
    %v488 = vmul.f32 %v157, %v485
    %489 = vrot.lane.b32.xlu0 %v152, 104
    %v490 = vpop.permute.xlu0 %489
    %491 = vrot.lane.b32.xlu0 %v157, 104
    %v492 = vpop.permute.xlu0 %491
    %495 = vrot.lane.b32.xlu0 %v487, 96
    %v496 = vpop.permute.xlu0 %495
    %497 = vrot.lane.b32.xlu0 %v488, 96
    %v498 = vpop.permute.xlu0 %497
    %v499 = vsel %vm198, %v490, 0
    %v501 = vsel %vm198, %v492, 0
    %v503 = vsel %vm198, %v496, 0
    %v505 = vsel %vm198, %v498, 0
    %507 = vmatprep.subr.mxu0 0.0
    %508 = vmatpush1.xpose.msra.mxu0 0.0
    %509 = vmatprep.subr.mxu0 0.0
    %510 = vmatpush1.xpose.msra.mxu0 0.0
    %511 = vmatprep.subr.mxu0 0.0
    %512 = vmatpush1.xpose.msra.mxu0 0.0
    %513 = vmatprep.subr.mxu0 0.0
    %514 = vmatpush1.xpose.msra.mxu0 0.0
    %515 = vmatprep.subr.mxu0 0.0
    %516 = vmatpush1.xpose.msra.mxu0 0.0
    %517 = vmatprep.subr.mxu0 0.0
    %518 = vmatpush1.xpose.msra.mxu0 0.0
    %519 = vmatprep.subr.mxu0 0.0
    %520 = vmatpush1.xpose.msra.mxu0 0.0
    %521 = vmatprep.subr.mxu0 0.0
    %522 = vmatpush1.xpose.msra.mxu0 0.0
    %523 = vmatprep.subr.mxu0 0.0
    %524 = vmatpush1.xpose.msra.mxu0 0.0
    %525 = vmatprep.subr.mxu0 0.0
    %526 = vmatpush1.xpose.msra.mxu0 0.0
    %527 = vmatprep.subr.mxu0 0.0
    %528 = vmatpush1.xpose.msra.mxu0 0.0
    %529 = vmatprep.subr.mxu0 0.0
    %530 = vmatpush1.xpose.msra.mxu0 0.0
    %531 = vmatprep.subr.mxu0 0.0
    %532 = vmatpush1.xpose.msra.mxu0 0.0
    %533 = vmatprep.subr.mxu0 0.0
    %534 = vmatpush1.xpose.msra.mxu0 0.0
    %535 = vmatprep.subr.mxu0 0.0
    %536 = vmatpush1.xpose.msra.mxu0 %v505
    %537 = vmatprep.subr.mxu0 0.0
    %538 = vmatpush1.xpose.msra.mxu0 %v503
    %539 = vmatprep.subr.mxu0 0.0
    %540 = vmatpush2.xpose.msra.mxu0 0.0
    %541 = vmatprep.subr.mxu0 0.0
    %542 = vmatpush2.xpose.msra.mxu0 0.0
    %543 = vmatprep.subr.mxu0 0.0
    %544 = vmatpush2.xpose.msra.mxu0 0.0
    %545 = vmatprep.subr.mxu0 0.0
    %546 = vmatpush2.xpose.msra.mxu0 0.0
    %547 = vmatprep.subr.mxu0 0.0
    %548 = vmatpush2.xpose.msra.mxu0 0.0
    %549 = vmatprep.subr.mxu0 0.0
    %550 = vmatpush2.xpose.msra.mxu0 0.0
    %551 = vmatprep.subr.mxu0 0.0
    %552 = vmatpush2.xpose.msra.mxu0 0.0
    %553 = vmatprep.subr.mxu0 0.0
    %554 = vmatpush2.xpose.msra.mxu0 0.0
    %555 = vmatprep.subr.mxu0 0.0
    %556 = vmatpush2.xpose.msra.mxu0 0.0
    %557 = vmatprep.subr.mxu0 0.0
    %558 = vmatpush2.xpose.msra.mxu0 0.0
    %559 = vmatprep.subr.mxu0 0.0
    %560 = vmatpush2.xpose.msra.mxu0 0.0
    %561 = vmatprep.subr.mxu0 0.0
    %562 = vmatpush2.xpose.msra.mxu0 0.0
    %563 = vmatprep.subr.mxu0 0.0
    %564 = vmatpush2.xpose.msra.mxu0 0.0
    %565 = vmatprep.subr.mxu0 0.0
    %566 = vmatpush2.xpose.msra.mxu0 0.0
    %567 = vmatprep.subr.mxu0 0.0
    %568 = vmatpush2.xpose.msra.mxu0 0.0
    %569 = vmatprep.subr.mxu0 0.0
    %570 = vmatpush2.xpose.msra.mxu0 0.0
    %571 = vmatprep.mubr.f32.mxu0 0.0
    %572 = vmatmul.mubr.f32.gmra.mxu0 %v499
    %v573 = vpop.f32.mrf.mxu0
    %v574 = vadd.f32 %v183, %v573
    %v575 = vpop.f32.mrf.mxu0
    %576 = vmatprep.mubr.f32.mxu0 0.0
    %577 = vmatmul.mubr.f32.gmra.mxu0 %v501
    %v578 = vpop.f32.mrf.mxu0
    %v579 = vadd.f32 %v184, %v578
    %v580 = vpop.f32.mrf.mxu0
    %581 = vdwg.mxu0
    %v582 = vsel %vm284, %v574, -inf
    %583 = vmax.xlane.f32.xlu0 %v582
    %v584 = vpop.xlane.xlu0 %583
    %v585 = vsel %vm284, %v579, -inf
    %586 = vmax.xlane.f32.xlu0 %v585
    %v587 = vpop.xlane.xlu0 %586
    %v588 = vsub.f32 %v574, %v584
    %v589 = vsub.f32 %v579, %v587
    %v590 = vmul.f32 %v588, 1.442695
    %v591 = vpow.pop %v590
    %v592 = vmul.f32 %v589, 1.442695
    %v593 = vpow.pop %v592
    %v594 = vsel %vm284, %v591, 0.0
    %595 = vadd.xlane.f32.xlu0 %v594
    %v596 = vpop.xlane.xlu0 %595
    %v597 = vsel %vm284, %v593, 0.0
    %598 = vadd.xlane.f32.xlu0 %v597
    %v599 = vpop.xlane.xlu0 %598
    %v600 = vrcp.pop %v596
    %v601 = vrcp.pop %v599
    %v602 = vmul.f32 %v591, %v600
    %v603 = vmul.f32 %v593, %v601
    %604 = vrot.lane.b32.xlu0 %v152, 88
    %v605 = vpop.permute.xlu0 %604
    %606 = vrot.lane.b32.xlu0 %v157, 88
    %v607 = vpop.permute.xlu0 %606
    %v611 = vsel %vm284, %v602, 0
    %v614 = vsel %vm284, %v603, 0
    %616 = vmatprep.subr.mxu0 0.0
    %617 = vmatpush1.msra.mxu0 0.0
    %618 = vmatprep.subr.mxu0 0.0
    %619 = vmatpush1.msra.mxu0 0.0
    %620 = vmatprep.subr.mxu0 0.0
    %621 = vmatpush1.msra.mxu0 0.0
    %622 = vmatprep.subr.mxu0 0.0
    %623 = vmatpush1.msra.mxu0 0.0
    %624 = vmatprep.subr.mxu0 0.0
    %625 = vmatpush1.msra.mxu0 0.0
    %626 = vmatprep.subr.mxu0 0.0
    %627 = vmatpush1.msra.mxu0 0.0
    %628 = vmatprep.subr.mxu0 0.0
    %629 = vmatpush1.msra.mxu0 0.0
    %630 = vmatprep.subr.mxu0 0.0
    %631 = vmatpush1.msra.mxu0 0.0
    %632 = vmatprep.subr.mxu0 0.0
    %633 = vmatpush1.msra.mxu0 0.0
    %634 = vmatprep.subr.mxu0 0.0
    %635 = vmatpush1.msra.mxu0 0.0
    %636 = vmatprep.subr.mxu0 0.0
    %637 = vmatpush1.msra.mxu0 0.0
    %638 = vmatprep.subr.mxu0 0.0
    %639 = vmatpush1.msra.mxu0 0.0
    %640 = vmatprep.subr.mxu0 0.0
    %641 = vmatpush1.msra.mxu0 0.0
    %642 = vmatprep.subr.mxu0 0.0
    %643 = vmatpush1.msra.mxu0 0.0
    %644 = vmatprep.subr.mxu0 0.0
    %645 = vmatpush1.msra.mxu0 %v607
    %646 = vmatprep.subr.mxu0 0.0
    %647 = vmatpush1.msra.mxu0 %v605
    %648 = vmatprep.subr.mxu0 0.0
    %649 = vmatpush2.msra.mxu0 0.0
    %650 = vmatprep.subr.mxu0 0.0
    %651 = vmatpush2.msra.mxu0 0.0
    %652 = vmatprep.subr.mxu0 0.0
    %653 = vmatpush2.msra.mxu0 0.0
    %654 = vmatprep.subr.mxu0 0.0
    %655 = vmatpush2.msra.mxu0 0.0
    %656 = vmatprep.subr.mxu0 0.0
    %657 = vmatpush2.msra.mxu0 0.0
    %658 = vmatprep.subr.mxu0 0.0
    %659 = vmatpush2.msra.mxu0 0.0
    %660 = vmatprep.subr.mxu0 0.0
    %661 = vmatpush2.msra.mxu0 0.0
    %662 = vmatprep.subr.mxu0 0.0
    %663 = vmatpush2.msra.mxu0 0.0
    %664 = vmatprep.subr.mxu0 0.0
    %665 = vmatpush2.msra.mxu0 0.0
    %666 = vmatprep.subr.mxu0 0.0
    %667 = vmatpush2.msra.mxu0 0.0
    %668 = vmatprep.subr.mxu0 0.0
    %669 = vmatpush2.msra.mxu0 0.0
    %670 = vmatprep.subr.mxu0 0.0
    %671 = vmatpush2.msra.mxu0 0.0
    %672 = vmatprep.subr.mxu0 0.0
    %673 = vmatpush2.msra.mxu0 0.0
    %674 = vmatprep.subr.mxu0 0.0
    %675 = vmatpush2.msra.mxu0 0.0
    %676 = vmatprep.subr.mxu0 0.0
    %677 = vmatpush2.msra.mxu0 0.0
    %678 = vmatprep.subr.mxu0 0.0
    %679 = vmatpush2.msra.mxu0 0.0
    %680 = vmatprep.mubr.f32.mxu0 0.0
    %681 = vmatmul.mubr.f32.gmra.mxu0 %v611
    %v682 = vpop.f32.mrf.mxu0
    %v683 = vadd.f32 0.0, %v682
    %v684 = vpop.f32.mrf.mxu0
    %685 = vmatprep.mubr.f32.mxu0 0.0
    %686 = vmatmul.mubr.f32.gmra.mxu0 %v614
    %v687 = vpop.f32.mrf.mxu0
    %v688 = vadd.f32 0.0, %v687
    %v689 = vpop.f32.mrf.mxu0
    %690 = vdwg.mxu0
    %v691 = vld [vmem:[#allocation7 + $0x8] sm:$0xff]
    %v693 = vsel %vm198, %v683, 0
    %v696 = vsel %vm198, %v688, 0
    %698 = vmatprep.subr.mxu0 0.0
    %699 = vmatpush1.msra.mxu0 0.0
    %700 = vmatprep.subr.mxu0 0.0
    %701 = vmatpush1.msra.mxu0 0.0
    %702 = vmatprep.subr.mxu0 0.0
    %703 = vmatpush1.msra.mxu0 0.0
    %704 = vmatprep.subr.mxu0 0.0
    %705 = vmatpush1.msra.mxu0 0.0
    %706 = vmatprep.subr.mxu0 0.0
    %707 = vmatpush1.msra.mxu0 0.0
    %708 = vmatprep.subr.mxu0 0.0
    %709 = vmatpush1.msra.mxu0 0.0
    %710 = vmatprep.subr.mxu0 0.0
    %711 = vmatpush1.msra.mxu0 0.0
    %712 = vmatprep.subr.mxu0 0.0
    %713 = vmatpush1.msra.mxu0 0.0
    %714 = vmatprep.subr.mxu0 0.0
    %715 = vmatpush1.msra.mxu0 0.0
    %716 = vmatprep.subr.mxu0 0.0
    %717 = vmatpush1.msra.mxu0 0.0
    %718 = vmatprep.subr.mxu0 0.0
    %719 = vmatpush1.msra.mxu0 0.0
    %720 = vmatprep.subr.mxu0 0.0
    %721 = vmatpush1.msra.mxu0 0.0
    %722 = vmatprep.subr.mxu0 0.0
    %723 = vmatpush1.msra.mxu0 0.0
    %724 = vmatprep.subr.mxu0 0.0
    %725 = vmatpush1.msra.mxu0 0.0
    %726 = vmatprep.subr.mxu0 0.0
    %727 = vmatpush1.msra.mxu0 0.0
    %728 = vmatprep.subr.mxu0 0.0
    %729 = vmatpush1.msra.mxu0 %v691
    %730 = vmatprep.subr.mxu0 0.0
    %731 = vmatpush2.msra.mxu0 0.0
    %732 = vmatprep.subr.mxu0 0.0
    %733 = vmatpush2.msra.mxu0 0.0
    %734 = vmatprep.subr.mxu0 0.0
    %735 = vmatpush2.msra.mxu0 0.0
    %736 = vmatprep.subr.mxu0 0.0
    %737 = vmatpush2.msra.mxu0 0.0
    %738 = vmatprep.subr.mxu0 0.0
    %739 = vmatpush2.msra.mxu0 0.0
    %740 = vmatprep.subr.mxu0 0.0
    %741 = vmatpush2.msra.mxu0 0.0
    %742 = vmatprep.subr.mxu0 0.0
    %743 = vmatpush2.msra.mxu0 0.0
    %744 = vmatprep.subr.mxu0 0.0
    %745 = vmatpush2.msra.mxu0 0.0
    %746 = vmatprep.subr.mxu0 0.0
    %747 = vmatpush2.msra.mxu0 0.0
    %748 = vmatprep.subr.mxu0 0.0
    %749 = vmatpush2.msra.mxu0 0.0
    %750 = vmatprep.subr.mxu0 0.0
    %751 = vmatpush2.msra.mxu0 0.0
    %752 = vmatprep.subr.mxu0 0.0
    %753 = vmatpush2.msra.mxu0 0.0
    %754 = vmatprep.subr.mxu0 0.0
    %755 = vmatpush2.msra.mxu0 0.0
    %756 = vmatprep.subr.mxu0 0.0
    %757 = vmatpush2.msra.mxu0 0.0
    %758 = vmatprep.subr.mxu0 0.0
    %759 = vmatpush2.msra.mxu0 0.0
    %760 = vmatprep.subr.mxu0 0.0
    %761 = vmatpush2.msra.mxu0 0.0
    %762 = vmatprep.mubr.f32.mxu0 0.0
    %763 = vmatmul.mubr.f32.gmra.mxu0 %v693
    %v764 = vpop.f32.mrf.mxu0
    %v765 = vadd.f32 0.0, %v764
    %v766 = vpop.f32.mrf.mxu0
    %767 = vmatprep.mubr.f32.mxu0 0.0
    %768 = vmatmul.mubr.f32.gmra.mxu0 %v696
    %v769 = vpop.f32.mrf.mxu0
    %v770 = vadd.f32 0.0, %v769
    %v771 = vpop.f32.mrf.mxu0
    %772 = vdwg.mxu0
    %v773 = vadd.f32 %v482, %v765
    %v774 = vadd.f32 %v483, %v770
    %775 = vrot.lane.b32.xlu0 %v163, 56
    %v776 = vpop.permute.xlu0 %775
    %v778 = vmul.f32 %v152, %v776
    %v779 = vmul.f32 %v157, %v776
    %780 = vrot.lane.b32.xlu0 %v152, 80
    %v781 = vpop.permute.xlu0 %780
    %782 = vrot.lane.b32.xlu0 %v157, 80
    %v783 = vpop.permute.xlu0 %782
    %786 = vrot.lane.b32.xlu0 %v778, 72
    %v787 = vpop.permute.xlu0 %786
    %788 = vrot.lane.b32.xlu0 %v779, 72
    %v789 = vpop.permute.xlu0 %788
    %v790 = vsel %vm198, %v781, 0
    %v792 = vsel %vm198, %v783, 0
    %v794 = vsel %vm198, %v787, 0
    %v796 = vsel %vm198, %v789, 0
    %798 = vmatprep.subr.mxu0 0.0
    %799 = vmatpush1.xpose.msra.mxu0 0.0
    %800 = vmatprep.subr.mxu0 0.0
    %801 = vmatpush1.xpose.msra.mxu0 0.0
    %802 = vmatprep.subr.mxu0 0.0
    %803 = vmatpush1.xpose.msra.mxu0 0.0
    %804 = vmatprep.subr.mxu0 0.0
    %805 = vmatpush1.xpose.msra.mxu0 0.0
    %806 = vmatprep.subr.mxu0 0.0
    %807 = vmatpush1.xpose.msra.mxu0 0.0
    %808 = vmatprep.subr.mxu0 0.0
    %809 = vmatpush1.xpose.msra.mxu0 0.0
    %810 = vmatprep.subr.mxu0 0.0
    %811 = vmatpush1.xpose.msra.mxu0 0.0
    %812 = vmatprep.subr.mxu0 0.0
    %813 = vmatpush1.xpose.msra.mxu0 0.0
    %814 = vmatprep.subr.mxu0 0.0
    %815 = vmatpush1.xpose.msra.mxu0 0.0
    %816 = vmatprep.subr.mxu0 0.0
    %817 = vmatpush1.xpose.msra.mxu0 0.0
    %818 = vmatprep.subr.mxu0 0.0
    %819 = vmatpush1.xpose.msra.mxu0 0.0
    %820 = vmatprep.subr.mxu0 0.0
    %821 = vmatpush1.xpose.msra.mxu0 0.0
    %822 = vmatprep.subr.mxu0 0.0
    %823 = vmatpush1.xpose.msra.mxu0 0.0
    %824 = vmatprep.subr.mxu0 0.0
    %825 = vmatpush1.xpose.msra.mxu0 0.0
    %826 = vmatprep.subr.mxu0 0.0
    %827 = vmatpush1.xpose.msra.mxu0 %v796
    %828 = vmatprep.subr.mxu0 0.0
    %829 = vmatpush1.xpose.msra.mxu0 %v794
    %830 = vmatprep.subr.mxu0 0.0
    %831 = vmatpush2.xpose.msra.mxu0 0.0
    %832 = vmatprep.subr.mxu0 0.0
    %833 = vmatpush2.xpose.msra.mxu0 0.0
    %834 = vmatprep.subr.mxu0 0.0
    %835 = vmatpush2.xpose.msra.mxu0 0.0
    %836 = vmatprep.subr.mxu0 0.0
    %837 = vmatpush2.xpose.msra.mxu0 0.0
    %838 = vmatprep.subr.mxu0 0.0
    %839 = vmatpush2.xpose.msra.mxu0 0.0
    %840 = vmatprep.subr.mxu0 0.0
    %841 = vmatpush2.xpose.msra.mxu0 0.0
    %842 = vmatprep.subr.mxu0 0.0
    %843 = vmatpush2.xpose.msra.mxu0 0.0
    %844 = vmatprep.subr.mxu0 0.0
    %845 = vmatpush2.xpose.msra.mxu0 0.0
    %846 = vmatprep.subr.mxu0 0.0
    %847 = vmatpush2.xpose.msra.mxu0 0.0
    %848 = vmatprep.subr.mxu0 0.0
    %849 = vmatpush2.xpose.msra.mxu0 0.0
    %850 = vmatprep.subr.mxu0 0.0
    %851 = vmatpush2.xpose.msra.mxu0 0.0
    %852 = vmatprep.subr.mxu0 0.0
    %853 = vmatpush2.xpose.msra.mxu0 0.0
    %854 = vmatprep.subr.mxu0 0.0
    %855 = vmatpush2.xpose.msra.mxu0 0.0
    %856 = vmatprep.subr.mxu0 0.0
    %857 = vmatpush2.xpose.msra.mxu0 0.0
    %858 = vmatprep.subr.mxu0 0.0
    %859 = vmatpush2.xpose.msra.mxu0 0.0
    %860 = vmatprep.subr.mxu0 0.0
    %861 = vmatpush2.xpose.msra.mxu0 0.0
    %862 = vmatprep.mubr.f32.mxu0 0.0
    %863 = vmatmul.mubr.f32.gmra.mxu0 %v790
    %v864 = vpop.f32.mrf.mxu0
    %v865 = vadd.f32 %v183, %v864
    %v866 = vpop.f32.mrf.mxu0
    %867 = vmatprep.mubr.f32.mxu0 0.0
    %868 = vmatmul.mubr.f32.gmra.mxu0 %v792
    %v869 = vpop.f32.mrf.mxu0
    %v870 = vadd.f32 %v184, %v869
    %v871 = vpop.f32.mrf.mxu0
    %872 = vdwg.mxu0
    %v873 = vsel %vm284, %v865, -inf
    %874 = vmax.xlane.f32.xlu0 %v873
    %v875 = vpop.xlane.xlu0 %874
    %v876 = vsel %vm284, %v870, -inf
    %877 = vmax.xlane.f32.xlu0 %v876
    %v878 = vpop.xlane.xlu0 %877
    %v879 = vsub.f32 %v865, %v875
    %v880 = vsub.f32 %v870, %v878
    %v881 = vmul.f32 %v879, 1.442695
    %v882 = vpow.pop %v881
    %v883 = vmul.f32 %v880, 1.442695
    %v884 = vpow.pop %v883
    %v885 = vsel %vm284, %v882, 0.0
    %886 = vadd.xlane.f32.xlu0 %v885
    %v887 = vpop.xlane.xlu0 %886
    %v888 = vsel %vm284, %v884, 0.0
    %889 = vadd.xlane.f32.xlu0 %v888
    %v890 = vpop.xlane.xlu0 %889
    %v891 = vrcp.pop %v887
    %v892 = vrcp.pop %v890
    %v893 = vmul.f32 %v882, %v891
    %v894 = vmul.f32 %v884, %v892
    %895 = vrot.lane.b32.xlu0 %v152, 64
    %v896 = vpop.permute.xlu0 %895
    %897 = vrot.lane.b32.xlu0 %v157, 64
    %v898 = vpop.permute.xlu0 %897
    %v902 = vsel %vm284, %v893, 0
    %v905 = vsel %vm284, %v894, 0
    %907 = vmatprep.subr.mxu0 0.0
    %908 = vmatpush1.msra.mxu0 0.0
    %909 = vmatprep.subr.mxu0 0.0
    %910 = vmatpush1.msra.mxu0 0.0
    %911 = vmatprep.subr.mxu0 0.0
    %912 = vmatpush1.msra.mxu0 0.0
    %913 = vmatprep.subr.mxu0 0.0
    %914 = vmatpush1.msra.mxu0 0.0
    %915 = vmatprep.subr.mxu0 0.0
    %916 = vmatpush1.msra.mxu0 0.0
    %917 = vmatprep.subr.mxu0 0.0
    %918 = vmatpush1.msra.mxu0 0.0
    %919 = vmatprep.subr.mxu0 0.0
    %920 = vmatpush1.msra.mxu0 0.0
    %921 = vmatprep.subr.mxu0 0.0
    %922 = vmatpush1.msra.mxu0 0.0
    %923 = vmatprep.subr.mxu0 0.0
    %924 = vmatpush1.msra.mxu0 0.0
    %925 = vmatprep.subr.mxu0 0.0
    %926 = vmatpush1.msra.mxu0 0.0
    %927 = vmatprep.subr.mxu0 0.0
    %928 = vmatpush1.msra.mxu0 0.0
    %929 = vmatprep.subr.mxu0 0.0
    %930 = vmatpush1.msra.mxu0 0.0
    %931 = vmatprep.subr.mxu0 0.0
    %932 = vmatpush1.msra.mxu0 0.0
    %933 = vmatprep.subr.mxu0 0.0
    %934 = vmatpush1.msra.mxu0 0.0
    %935 = vmatprep.subr.mxu0 0.0
    %936 = vmatpush1.msra.mxu0 %v898
    %937 = vmatprep.subr.mxu0 0.0
    %938 = vmatpush1.msra.mxu0 %v896
    %939 = vmatprep.subr.mxu0 0.0
    %940 = vmatpush2.msra.mxu0 0.0
    %941 = vmatprep.subr.mxu0 0.0
    %942 = vmatpush2.msra.mxu0 0.0
    %943 = vmatprep.subr.mxu0 0.0
    %944 = vmatpush2.msra.mxu0 0.0
    %945 = vmatprep.subr.mxu0 0.0
    %946 = vmatpush2.msra.mxu0 0.0
    %947 = vmatprep.subr.mxu0 0.0
    %948 = vmatpush2.msra.mxu0 0.0
    %949 = vmatprep.subr.mxu0 0.0
    %950 = vmatpush2.msra.mxu0 0.0
    %951 = vmatprep.subr.mxu0 0.0
    %952 = vmatpush2.msra.mxu0 0.0
    %953 = vmatprep.subr.mxu0 0.0
    %954 = vmatpush2.msra.mxu0 0.0
    %955 = vmatprep.subr.mxu0 0.0
    %956 = vmatpush2.msra.mxu0 0.0
    %957 = vmatprep.subr.mxu0 0.0
    %958 = vmatpush2.msra.mxu0 0.0
    %959 = vmatprep.subr.mxu0 0.0
    %960 = vmatpush2.msra.mxu0 0.0
    %961 = vmatprep.subr.mxu0 0.0
    %962 = vmatpush2.msra.mxu0 0.0
    %963 = vmatprep.subr.mxu0 0.0
    %964 = vmatpush2.msra.mxu0 0.0
    %965 = vmatprep.subr.mxu0 0.0
    %966 = vmatpush2.msra.mxu0 0.0
    %967 = vmatprep.subr.mxu0 0.0
    %968 = vmatpush2.msra.mxu0 0.0
    %969 = vmatprep.subr.mxu0 0.0
    %970 = vmatpush2.msra.mxu0 0.0
    %971 = vmatprep.mubr.f32.mxu0 0.0
    %972 = vmatmul.mubr.f32.gmra.mxu0 %v902
    %v973 = vpop.f32.mrf.mxu0
    %v974 = vadd.f32 0.0, %v973
    %v975 = vpop.f32.mrf.mxu0
    %976 = vmatprep.mubr.f32.mxu0 0.0
    %977 = vmatmul.mubr.f32.gmra.mxu0 %v905
    %v978 = vpop.f32.mrf.mxu0
    %v979 = vadd.f32 0.0, %v978
    %v980 = vpop.f32.mrf.mxu0
    %981 = vdwg.mxu0
    %v982 = vld [vmem:[#allocation7 + $0x10] sm:$0xff]
    %v984 = vsel %vm198, %v974, 0
    %v987 = vsel %vm198, %v979, 0
    %989 = vmatprep.subr.mxu0 0.0
    %990 = vmatpush1.msra.mxu0 0.0
    %991 = vmatprep.subr.mxu0 0.0
    %992 = vmatpush1.msra.mxu0 0.0
    %993 = vmatprep.subr.mxu0 0.0
    %994 = vmatpush1.msra.mxu0 0.0
    %995 = vmatprep.subr.mxu0 0.0
    %996 = vmatpush1.msra.mxu0 0.0
    %997 = vmatprep.subr.mxu0 0.0
    %998 = vmatpush1.msra.mxu0 0.0
    %999 = vmatprep.subr.mxu0 0.0
    %1000 = vmatpush1.msra.mxu0 0.0
    %1001 = vmatprep.subr.mxu0 0.0
    %1002 = vmatpush1.msra.mxu0 0.0
    %1003 = vmatprep.subr.mxu0 0.0
    %1004 = vmatpush1.msra.mxu0 0.0
    %1005 = vmatprep.subr.mxu0 0.0
    %1006 = vmatpush1.msra.mxu0 0.0
    %1007 = vmatprep.subr.mxu0 0.0
    %1008 = vmatpush1.msra.mxu0 0.0
    %1009 = vmatprep.subr.mxu0 0.0
    %1010 = vmatpush1.msra.mxu0 0.0
    %1011 = vmatprep.subr.mxu0 0.0
    %1012 = vmatpush1.msra.mxu0 0.0
    %1013 = vmatprep.subr.mxu0 0.0
    %1014 = vmatpush1.msra.mxu0 0.0
    %1015 = vmatprep.subr.mxu0 0.0
    %1016 = vmatpush1.msra.mxu0 0.0
    %1017 = vmatprep.subr.mxu0 0.0
    %1018 = vmatpush1.msra.mxu0 0.0
    %1019 = vmatprep.subr.mxu0 0.0
    %1020 = vmatpush1.msra.mxu0 %v982
    %1021 = vmatprep.subr.mxu0 0.0
    %1022 = vmatpush2.msra.mxu0 0.0
    %1023 = vmatprep.subr.mxu0 0.0
    %1024 = vmatpush2.msra.mxu0 0.0
    %1025 = vmatprep.subr.mxu0 0.0
    %1026 = vmatpush2.msra.mxu0 0.0
    %1027 = vmatprep.subr.mxu0 0.0
    %1028 = vmatpush2.msra.mxu0 0.0
    %1029 = vmatprep.subr.mxu0 0.0
    %1030 = vmatpush2.msra.mxu0 0.0
    %1031 = vmatprep.subr.mxu0 0.0
    %1032 = vmatpush2.msra.mxu0 0.0
    %1033 = vmatprep.subr.mxu0 0.0
    %1034 = vmatpush2.msra.mxu0 0.0
    %1035 = vmatprep.subr.mxu0 0.0
    %1036 = vmatpush2.msra.mxu0 0.0
    %1037 = vmatprep.subr.mxu0 0.0
    %1038 = vmatpush2.msra.mxu0 0.0
    %1039 = vmatprep.subr.mxu0 0.0
    %1040 = vmatpush2.msra.mxu0 0.0
    %1041 = vmatprep.subr.mxu0 0.0
    %1042 = vmatpush2.msra.mxu0 0.0
    %1043 = vmatprep.subr.mxu0 0.0
    %1044 = vmatpush2.msra.mxu0 0.0
    %1045 = vmatprep.subr.mxu0 0.0
    %1046 = vmatpush2.msra.mxu0 0.0
    %1047 = vmatprep.subr.mxu0 0.0
    %1048 = vmatpush2.msra.mxu0 0.0
    %1049 = vmatprep.subr.mxu0 0.0
    %1050 = vmatpush2.msra.mxu0 0.0
    %1051 = vmatprep.subr.mxu0 0.0
    %1052 = vmatpush2.msra.mxu0 0.0
    %1053 = vmatprep.mubr.f32.mxu0 0.0
    %1054 = vmatmul.mubr.f32.gmra.mxu0 %v984
    %v1055 = vpop.f32.mrf.mxu0
    %v1056 = vadd.f32 0.0, %v1055
    %v1057 = vpop.f32.mrf.mxu0
    %1058 = vmatprep.mubr.f32.mxu0 0.0
    %1059 = vmatmul.mubr.f32.gmra.mxu0 %v987
    %v1060 = vpop.f32.mrf.mxu0
    %v1061 = vadd.f32 0.0, %v1060
    %v1062 = vpop.f32.mrf.mxu0
    %1063 = vdwg.mxu0
    %v1064 = vadd.f32 %v773, %v1056
    %v1065 = vadd.f32 %v774, %v1061
    %1066 = vrot.lane.b32.xlu0 %v163, 80
    %v1067 = vpop.permute.xlu0 %1066
    %v1069 = vmul.f32 %v152, %v1067
    %v1070 = vmul.f32 %v157, %v1067
    %1071 = vrot.lane.b32.xlu0 %v152, 56
    %v1072 = vpop.permute.xlu0 %1071
    %1073 = vrot.lane.b32.xlu0 %v157, 56
    %v1074 = vpop.permute.xlu0 %1073
    %1077 = vrot.lane.b32.xlu0 %v1069, 48
    %v1078 = vpop.permute.xlu0 %1077
    %1079 = vrot.lane.b32.xlu0 %v1070, 48
    %v1080 = vpop.permute.xlu0 %1079
    %v1081 = vsel %vm198, %v1072, 0
    %v1083 = vsel %vm198, %v1074, 0
    %v1085 = vsel %vm198, %v1078, 0
    %v1087 = vsel %vm198, %v1080, 0
    %1089 = vmatprep.subr.mxu0 0.0
    %1090 = vmatpush1.xpose.msra.mxu0 0.0
    %1091 = vmatprep.subr.mxu0 0.0
    %1092 = vmatpush1.xpose.msra.mxu0 0.0
    %1093 = vmatprep.subr.mxu0 0.0
    %1094 = vmatpush1.xpose.msra.mxu0 0.0
    %1095 = vmatprep.subr.mxu0 0.0
    %1096 = vmatpush1.xpose.msra.mxu0 0.0
    %1097 = vmatprep.subr.mxu0 0.0
    %1098 = vmatpush1.xpose.msra.mxu0 0.0
    %1099 = vmatprep.subr.mxu0 0.0
    %1100 = vmatpush1.xpose.msra.mxu0 0.0
    %1101 = vmatprep.subr.mxu0 0.0
    %1102 = vmatpush1.xpose.msra.mxu0 0.0
    %1103 = vmatprep.subr.mxu0 0.0
    %1104 = vmatpush1.xpose.msra.mxu0 0.0
    %1105 = vmatprep.subr.mxu0 0.0
    %1106 = vmatpush1.xpose.msra.mxu0 0.0
    %1107 = vmatprep.subr.mxu0 0.0
    %1108 = vmatpush1.xpose.msra.mxu0 0.0
    %1109 = vmatprep.subr.mxu0 0.0
    %1110 = vmatpush1.xpose.msra.mxu0 0.0
    %1111 = vmatprep.subr.mxu0 0.0
    %1112 = vmatpush1.xpose.msra.mxu0 0.0
    %1113 = vmatprep.subr.mxu0 0.0
    %1114 = vmatpush1.xpose.msra.mxu0 0.0
    %1115 = vmatprep.subr.mxu0 0.0
    %1116 = vmatpush1.xpose.msra.mxu0 0.0
    %1117 = vmatprep.subr.mxu0 0.0
    %1118 = vmatpush1.xpose.msra.mxu0 %v1087
    %1119 = vmatprep.subr.mxu0 0.0
    %1120 = vmatpush1.xpose.msra.mxu0 %v1085
    %1121 = vmatprep.subr.mxu0 0.0
    %1122 = vmatpush2.xpose.msra.mxu0 0.0
    %1123 = vmatprep.subr.mxu0 0.0
    %1124 = vmatpush2.xpose.msra.mxu0 0.0
    %1125 = vmatprep.subr.mxu0 0.0
    %1126 = vmatpush2.xpose.msra.mxu0 0.0
    %1127 = vmatprep.subr.mxu0 0.0
    %1128 = vmatpush2.xpose.msra.mxu0 0.0
    %1129 = vmatprep.subr.mxu0 0.0
    %1130 = vmatpush2.xpose.msra.mxu0 0.0
    %1131 = vmatprep.subr.mxu0 0.0
    %1132 = vmatpush2.xpose.msra.mxu0 0.0
    %1133 = vmatprep.subr.mxu0 0.0
    %1134 = vmatpush2.xpose.msra.mxu0 0.0
    %1135 = vmatprep.subr.mxu0 0.0
    %1136 = vmatpush2.xpose.msra.mxu0 0.0
    %1137 = vmatprep.subr.mxu0 0.0
    %1138 = vmatpush2.xpose.msra.mxu0 0.0
    %1139 = vmatprep.subr.mxu0 0.0
    %1140 = vmatpush2.xpose.msra.mxu0 0.0
    %1141 = vmatprep.subr.mxu0 0.0
    %1142 = vmatpush2.xpose.msra.mxu0 0.0
    %1143 = vmatprep.subr.mxu0 0.0
    %1144 = vmatpush2.xpose.msra.mxu0 0.0
    %1145 = vmatprep.subr.mxu0 0.0
    %1146 = vmatpush2.xpose.msra.mxu0 0.0
    %1147 = vmatprep.subr.mxu0 0.0
    %1148 = vmatpush2.xpose.msra.mxu0 0.0
    %1149 = vmatprep.subr.mxu0 0.0
    %1150 = vmatpush2.xpose.msra.mxu0 0.0
    %1151 = vmatprep.subr.mxu0 0.0
    %1152 = vmatpush2.xpose.msra.mxu0 0.0
    %1153 = vmatprep.mubr.f32.mxu0 0.0
    %1154 = vmatmul.mubr.f32.gmra.mxu0 %v1081
    %v1155 = vpop.f32.mrf.mxu0
    %v1156 = vadd.f32 %v183, %v1155
    %v1157 = vpop.f32.mrf.mxu0
    %1158 = vmatprep.mubr.f32.mxu0 0.0
    %1159 = vmatmul.mubr.f32.gmra.mxu0 %v1083
    %v1160 = vpop.f32.mrf.mxu0
    %v1161 = vadd.f32 %v184, %v1160
    %v1162 = vpop.f32.mrf.mxu0
    %1163 = vdwg.mxu0
    %v1164 = vsel %vm284, %v1156, -inf
    %1165 = vmax.xlane.f32.xlu0 %v1164
    %v1166 = vpop.xlane.xlu0 %1165
    %v1167 = vsel %vm284, %v1161, -inf
    %1168 = vmax.xlane.f32.xlu0 %v1167
    %v1169 = vpop.xlane.xlu0 %1168
    %v1170 = vsub.f32 %v1156, %v1166
    %v1171 = vsub.f32 %v1161, %v1169
    %v1172 = vmul.f32 %v1170, 1.442695
    %v1173 = vpow.pop %v1172
    %v1174 = vmul.f32 %v1171, 1.442695
    %v1175 = vpow.pop %v1174
    %v1176 = vsel %vm284, %v1173, 0.0
    %1177 = vadd.xlane.f32.xlu0 %v1176
    %v1178 = vpop.xlane.xlu0 %1177
    %v1179 = vsel %vm284, %v1175, 0.0
    %1180 = vadd.xlane.f32.xlu0 %v1179
    %v1181 = vpop.xlane.xlu0 %1180
    %v1182 = vrcp.pop %v1178
    %v1183 = vrcp.pop %v1181
    %v1184 = vmul.f32 %v1173, %v1182
    %v1185 = vmul.f32 %v1175, %v1183
    %1186 = vrot.lane.b32.xlu0 %v152, 40
    %v1187 = vpop.permute.xlu0 %1186
    %1188 = vrot.lane.b32.xlu0 %v157, 40
    %v1189 = vpop.permute.xlu0 %1188
    %v1193 = vsel %vm284, %v1184, 0
    %v1196 = vsel %vm284, %v1185, 0
    %1198 = vmatprep.subr.mxu0 0.0
    %1199 = vmatpush1.msra.mxu0 0.0
    %1200 = vmatprep.subr.mxu0 0.0
    %1201 = vmatpush1.msra.mxu0 0.0
    %1202 = vmatprep.subr.mxu0 0.0
    %1203 = vmatpush1.msra.mxu0 0.0
    %1204 = vmatprep.subr.mxu0 0.0
    %1205 = vmatpush1.msra.mxu0 0.0
    %1206 = vmatprep.subr.mxu0 0.0
    %1207 = vmatpush1.msra.mxu0 0.0
    %1208 = vmatprep.subr.mxu0 0.0
    %1209 = vmatpush1.msra.mxu0 0.0
    %1210 = vmatprep.subr.mxu0 0.0
    %1211 = vmatpush1.msra.mxu0 0.0
    %1212 = vmatprep.subr.mxu0 0.0
    %1213 = vmatpush1.msra.mxu0 0.0
    %1214 = vmatprep.subr.mxu0 0.0
    %1215 = vmatpush1.msra.mxu0 0.0
    %1216 = vmatprep.subr.mxu0 0.0
    %1217 = vmatpush1.msra.mxu0 0.0
    %1218 = vmatprep.subr.mxu0 0.0
    %1219 = vmatpush1.msra.mxu0 0.0
    %1220 = vmatprep.subr.mxu0 0.0
    %1221 = vmatpush1.msra.mxu0 0.0
    %1222 = vmatprep.subr.mxu0 0.0
    %1223 = vmatpush1.msra.mxu0 0.0
    %1224 = vmatprep.subr.mxu0 0.0
    %1225 = vmatpush1.msra.mxu0 0.0
    %1226 = vmatprep.subr.mxu0 0.0
    %1227 = vmatpush1.msra.mxu0 %v1189
    %1228 = vmatprep.subr.mxu0 0.0
    %1229 = vmatpush1.msra.mxu0 %v1187
    %1230 = vmatprep.subr.mxu0 0.0
    %1231 = vmatpush2.msra.mxu0 0.0
    %1232 = vmatprep.subr.mxu0 0.0
    %1233 = vmatpush2.msra.mxu0 0.0
    %1234 = vmatprep.subr.mxu0 0.0
    %1235 = vmatpush2.msra.mxu0 0.0
    %1236 = vmatprep.subr.mxu0 0.0
    %1237 = vmatpush2.msra.mxu0 0.0
    %1238 = vmatprep.subr.mxu0 0.0
    %1239 = vmatpush2.msra.mxu0 0.0
    %1240 = vmatprep.subr.mxu0 0.0
    %1241 = vmatpush2.msra.mxu0 0.0
    %1242 = vmatprep.subr.mxu0 0.0
    %1243 = vmatpush2.msra.mxu0 0.0
    %1244 = vmatprep.subr.mxu0 0.0
    %1245 = vmatpush2.msra.mxu0 0.0
    %1246 = vmatprep.subr.mxu0 0.0
    %1247 = vmatpush2.msra.mxu0 0.0
    %1248 = vmatprep.subr.mxu0 0.0
    %1249 = vmatpush2.msra.mxu0 0.0
    %1250 = vmatprep.subr.mxu0 0.0
    %1251 = vmatpush2.msra.mxu0 0.0
    %1252 = vmatprep.subr.mxu0 0.0
    %1253 = vmatpush2.msra.mxu0 0.0
    %1254 = vmatprep.subr.mxu0 0.0
    %1255 = vmatpush2.msra.mxu0 0.0
    %1256 = vmatprep.subr.mxu0 0.0
    %1257 = vmatpush2.msra.mxu0 0.0
    %1258 = vmatprep.subr.mxu0 0.0
    %1259 = vmatpush2.msra.mxu0 0.0
    %1260 = vmatprep.subr.mxu0 0.0
    %1261 = vmatpush2.msra.mxu0 0.0
    %1262 = vmatprep.mubr.f32.mxu0 0.0
    %1263 = vmatmul.mubr.f32.gmra.mxu0 %v1193
    %v1264 = vpop.f32.mrf.mxu0
    %v1265 = vadd.f32 0.0, %v1264
    %v1266 = vpop.f32.mrf.mxu0
    %1267 = vmatprep.mubr.f32.mxu0 0.0
    %1268 = vmatmul.mubr.f32.gmra.mxu0 %v1196
    %v1269 = vpop.f32.mrf.mxu0
    %v1270 = vadd.f32 0.0, %v1269
    %v1271 = vpop.f32.mrf.mxu0
    %1272 = vdwg.mxu0
    %v1273 = vld [vmem:[#allocation7 + $0x18] sm:$0xff]
    %v1275 = vsel %vm198, %v1265, 0
    %v1278 = vsel %vm198, %v1270, 0
    %1280 = vmatprep.subr.mxu0 0.0
    %1281 = vmatpush1.msra.mxu0 0.0
    %1282 = vmatprep.subr.mxu0 0.0
    %1283 = vmatpush1.msra.mxu0 0.0
    %1284 = vmatprep.subr.mxu0 0.0
    %1285 = vmatpush1.msra.mxu0 0.0
    %1286 = vmatprep.subr.mxu0 0.0
    %1287 = vmatpush1.msra.mxu0 0.0
    %1288 = vmatprep.subr.mxu0 0.0
    %1289 = vmatpush1.msra.mxu0 0.0
    %1290 = vmatprep.subr.mxu0 0.0
    %1291 = vmatpush1.msra.mxu0 0.0
    %1292 = vmatprep.subr.mxu0 0.0
    %1293 = vmatpush1.msra.mxu0 0.0
    %1294 = vmatprep.subr.mxu0 0.0
    %1295 = vmatpush1.msra.mxu0 0.0
    %1296 = vmatprep.subr.mxu0 0.0
    %1297 = vmatpush1.msra.mxu0 0.0
    %1298 = vmatprep.subr.mxu0 0.0
    %1299 = vmatpush1.msra.mxu0 0.0
    %1300 = vmatprep.subr.mxu0 0.0
    %1301 = vmatpush1.msra.mxu0 0.0
    %1302 = vmatprep.subr.mxu0 0.0
    %1303 = vmatpush1.msra.mxu0 0.0
    %1304 = vmatprep.subr.mxu0 0.0
    %1305 = vmatpush1.msra.mxu0 0.0
    %1306 = vmatprep.subr.mxu0 0.0
    %1307 = vmatpush1.msra.mxu0 0.0
    %1308 = vmatprep.subr.mxu0 0.0
    %1309 = vmatpush1.msra.mxu0 0.0
    %1310 = vmatprep.subr.mxu0 0.0
    %1311 = vmatpush1.msra.mxu0 %v1273
    %1312 = vmatprep.subr.mxu0 0.0
    %1313 = vmatpush2.msra.mxu0 0.0
    %1314 = vmatprep.subr.mxu0 0.0
    %1315 = vmatpush2.msra.mxu0 0.0
    %1316 = vmatprep.subr.mxu0 0.0
    %1317 = vmatpush2.msra.mxu0 0.0
    %1318 = vmatprep.subr.mxu0 0.0
    %1319 = vmatpush2.msra.mxu0 0.0
    %1320 = vmatprep.subr.mxu0 0.0
    %1321 = vmatpush2.msra.mxu0 0.0
    %1322 = vmatprep.subr.mxu0 0.0
    %1323 = vmatpush2.msra.mxu0 0.0
    %1324 = vmatprep.subr.mxu0 0.0
    %1325 = vmatpush2.msra.mxu0 0.0
    %1326 = vmatprep.subr.mxu0 0.0
    %1327 = vmatpush2.msra.mxu0 0.0
    %1328 = vmatprep.subr.mxu0 0.0
    %1329 = vmatpush2.msra.mxu0 0.0
    %1330 = vmatprep.subr.mxu0 0.0
    %1331 = vmatpush2.msra.mxu0 0.0
    %1332 = vmatprep.subr.mxu0 0.0
    %1333 = vmatpush2.msra.mxu0 0.0
    %1334 = vmatprep.subr.mxu0 0.0
    %1335 = vmatpush2.msra.mxu0 0.0
    %1336 = vmatprep.subr.mxu0 0.0
    %1337 = vmatpush2.msra.mxu0 0.0
    %1338 = vmatprep.subr.mxu0 0.0
    %1339 = vmatpush2.msra.mxu0 0.0
    %1340 = vmatprep.subr.mxu0 0.0
    %1341 = vmatpush2.msra.mxu0 0.0
    %1342 = vmatprep.subr.mxu0 0.0
    %1343 = vmatpush2.msra.mxu0 0.0
    %1344 = vmatprep.mubr.f32.mxu0 0.0
    %1345 = vmatmul.mubr.f32.gmra.mxu0 %v1275
    %v1346 = vpop.f32.mrf.mxu0
    %v1347 = vadd.f32 0.0, %v1346
    %v1348 = vpop.f32.mrf.mxu0
    %1349 = vmatprep.mubr.f32.mxu0 0.0
    %1350 = vmatmul.mubr.f32.gmra.mxu0 %v1278
    %v1351 = vpop.f32.mrf.mxu0
    %v1352 = vadd.f32 0.0, %v1351
    %v1353 = vpop.f32.mrf.mxu0
    %1354 = vdwg.mxu0
    %v1355 = vadd.f32 %v1064, %v1347
    %v1356 = vadd.f32 %v1065, %v1352
    %1357 = vst.msk [vmem:[#allocation8] sm:$0xff] %vm78, %v1355
    %1358 = vst.msk [vmem:[#allocation8 + $0x8] sm:$0xff] %vm78, %v1356
    // Predicated region
    $region38: #{tpu_custom_call.1} parent=1 // pred_check
      _
    $region39: #{tpu_custom_call.1} parent=1 // pred_check_branch
      %1360 = sbr.rel (0) target = $region41
    $region40: #{tpu_custom_call.1} parent=1 // pred_region
      %s1362 = ssub.s32 256, 256
      %1363 = vsyncadd [#allocation4], %s1362
      %s1364 = sshll.u32 [#allocation8], 4
      %s1365 = int_to_ptr.vmem [resolvable:$true] %s1364
      %1370 = dma.vmem_to_hbm [thread:$0]  %s1365, 256, %s6, [#allocation4], 128, 128, 8
    $region41: #{tpu_custom_call.1} parent=1 // pred_fallthru
      _
    // Predicated region
    $region42: #{tpu_custom_call.1} parent=1 // pred_check
      _
    $region43: #{tpu_custom_call.1} parent=1 // pred_check_branch
      %1372 = sbr.rel (0) target = $region45
    $region44: #{tpu_custom_call.1} parent=1 // pred_region
      %1373 = dma.done [#allocation4], 256
    $region45: #{tpu_custom_call.1} parent=1 // pred_fallthru
      _
    %1374 = vsyncpa [#allocation3], 1
    %1375 = vsyncpa [#allocation6], 1
    %1376 = vsyncpa [#allocation4], 1

</llo_original>
